<compile_context>
chip_gen: v5e
topology: v5e:2x2
jax: 0.10.0
libtpu: 0.0.40
codegen_flags: <defaults>
</compile_context>

<pallas_src>
import math

import jax
import jax.numpy as jnp
from jax.experimental import pallas as pl
from jax.experimental.pallas import tpu as pltpu

# small, BERT-like config
B, S, H = 2, 8, 32          # batch, seq, hidden
NH = 4                      # attention heads
HD = H // NH                # head dim
I = 4 * H                   # FFN intermediate (= 128 -> exactly one lane tile)
VOCAB = 64
NLAYERS = 2
EPS = 1e-12

# rows of the per-layer packed parameter slab, shape (NLAYERS, 8, I)
(ROW_BQKV, ROW_BO, ROW_LN1G, ROW_LN1B,
 ROW_B1, ROW_B2, ROW_LN2G, ROW_LN2B) = range(8)


def _layernorm(x, g, b):
    mu = jnp.mean(x, axis=-1, keepdims=True)
    xc = x - mu
    var = jnp.mean(xc * xc, axis=-1, keepdims=True)
    return xc * jax.lax.rsqrt(var + EPS) * g + b


def _gelu(x):
    # TODO(synk): HF BERT default is the exact erf GELU; tanh approx used here.
    c = math.sqrt(2.0 / math.pi)
    return 0.5 * x * (1.0 + jnp.tanh(c * (x + 0.044715 * x * x * x)))


def _bf(x):
    return x.astype(jnp.bfloat16)


# ----------------------------------------------------------------------------
# fused encoder kernel: one grid step = (one sequence, one transformer layer)
# ----------------------------------------------------------------------------
def encoder_kernel(x0_ref, mask_ref, embln_ref,
                   wqkv_ref, wo_ref, w1_ref, w2_ref, slab_ref,
                   o_ref, x_s):
    l = pl.program_id(1)

    # layer 0: embedding LayerNorm into the VMEM activation carry
    @pl.when(l == 0)
    def _():
        embln = embln_ref[...]                                       # (2, H)
        x_s[...] = _layernorm(x0_ref[0], embln[0:1, :], embln[1:2, :])

    # per-layer streamed weights (double-buffered by the BlockSpec pipeline)
    wqkv = wqkv_ref[0]                                               # (H, 3H) bf16
    wo = wo_ref[0]                                                   # (H, H)  bf16
    w1 = w1_ref[0]                                                   # (H, I)  bf16
    w2 = w2_ref[0]                                                   # (I, H)  bf16
    sl = slab_ref[0]                                                 # (8, I)  f32
    bqkv = sl[ROW_BQKV:ROW_BQKV + 1, 0:3 * H]
    bo   = sl[ROW_BO:ROW_BO + 1, 0:H]
    ln1g = sl[ROW_LN1G:ROW_LN1G + 1, 0:H]
    ln1b = sl[ROW_LN1B:ROW_LN1B + 1, 0:H]
    b1   = sl[ROW_B1:ROW_B1 + 1, 0:I]
    b2   = sl[ROW_B2:ROW_B2 + 1, 0:H]
    ln2g = sl[ROW_LN2G:ROW_LN2G + 1, 0:H]
    ln2b = sl[ROW_LN2B:ROW_LN2B + 1, 0:H]

    x = x_s[...]                                                     # (S, H) f32
    mask = mask_ref[0]                                               # (1, S) additive key mask

    # fused QKV projection; single bf16 cast (1/sqrt(HD) folded into Wq/bq at init)
    qkv = _bf(jnp.dot(_bf(x), wqkv, preferred_element_type=jnp.float32) + bqkv)  # (S, 3H)
    q = qkv[:, 0 * H:1 * H].reshape(S, NH, HD)
    k = qkv[:, 1 * H:2 * H].reshape(S, NH, HD)
    v = qkv[:, 2 * H:3 * H].reshape(S, NH, HD)

    # head-batched attention: one score einsum, one softmax chain, one ctx einsum
    s = jnp.einsum('qhd,khd->hqk', q, k,
                   preferred_element_type=jnp.float32) + mask         # (NH, S, S)
    s = s - jnp.max(s, axis=-1, keepdims=True)
    p = jnp.exp(s)
    p = p * pl.reciprocal(jnp.sum(p, axis=-1, keepdims=True), approx=True)
    ctx = jnp.einsum('hqk,khd->qhd', _bf(p), v,
                     preferred_element_type=jnp.float32).reshape(S, H)

    attn = jnp.dot(_bf(ctx), wo, preferred_element_type=jnp.float32) + bo
    x1 = _layernorm(x + attn, ln1g, ln1b)

    mid = _gelu(jnp.dot(_bf(x1), w1, preferred_element_type=jnp.float32) + b1)
    ffn = jnp.dot(_bf(mid), w2, preferred_element_type=jnp.float32) + b2
    x_s[...] = _layernorm(x1 + ffn, ln2g, ln2b)

    # last layer: write only the CLS (position-0) row back to HBM
    @pl.when(l == pl.num_programs(1) - 1)
    def _():
        o_ref[0] = x_s[0:1, :]


# ----------------------------------------------------------------------------
# full encoder forward (mirrors SenBERTEncoder.forward -> cls = out[:, 0, :])
# ----------------------------------------------------------------------------
def senbert_encoder(input_ids, attention_mask, params):
    # embedding gathers are plain-JAX glue; sum word + position + token-type(0)
    we = params['word_emb'][input_ids]                        # (B, S, H)
    pe = params['pos_emb'][None, :, :]                        # (1, S, H)
    te = params['tok_emb'][0][None, None, :]                  # (1, 1, H)
    x0 = (we + pe + te).astype(jnp.float32)                   # (B, S, H)

    add_mask = ((1.0 - attention_mask.astype(jnp.float32)) * -1e9).reshape(B, 1, S)

    cls = pl.pallas_call(
        encoder_kernel,
        out_shape=jax.ShapeDtypeStruct((B, 1, H), jnp.float32),
        grid_spec=pltpu.PrefetchScalarGridSpec(
            num_scalar_prefetch=0,
            grid=(B, NLAYERS),                                        # layer axis last
            in_specs=[
                pl.BlockSpec((1, S, H), lambda b, l: (b, 0, 0)),      # token embeddings
                pl.BlockSpec((1, 1, S), lambda b, l: (b, 0, 0)),      # additive key mask
                pl.BlockSpec((2, H), lambda b, l: (0, 0)),            # embedding LN params
                pl.BlockSpec((1, H, 3 * H), lambda b, l: (l, 0, 0)),  # fused QKV weight
                pl.BlockSpec((1, H, H), lambda b, l: (l, 0, 0)),      # attn out weight
                pl.BlockSpec((1, H, I), lambda b, l: (l, 0, 0)),      # FFN in weight
                pl.BlockSpec((1, I, H), lambda b, l: (l, 0, 0)),      # FFN out weight
                pl.BlockSpec((1, 8, I), lambda b, l: (l, 0, 0)),      # packed biases + LN
            ],
            out_specs=pl.BlockSpec((1, 1, H), lambda b, l: (b, 0, 0)),
            scratch_shapes=[pltpu.VMEM((S, H), jnp.float32)],         # activation carry
        ),
        compiler_params=pltpu.CompilerParams(
            dimension_semantics=("parallel", "arbitrary")),
    )(x0, add_mask, params['emb_ln'],
      params['wqkv'], params['wo'], params['w1'], params['w2'], params['slab'])
    return cls.reshape(B, H)


# ----------------------------------------------------------------------------
# deterministic synthetic parameter init (stacked per-layer weights, packed slab)
# ----------------------------------------------------------------------------
def init_params(key):
    kit = iter(jax.random.split(key, 3 + NLAYERS * 12))

    def nrm(shape, scale=0.02):
        return scale * jax.random.normal(next(kit), shape, jnp.float32)

    params = {
        'word_emb': nrm((VOCAB, H)),
        'pos_emb': nrm((S, H)),
        'tok_emb': nrm((2, H)),
        # row 0 = gamma, row 1 = beta
        'emb_ln': jnp.concatenate(
            [jnp.ones((1, H), jnp.float32), jnp.zeros((1, H), jnp.float32)], axis=0),
    }

    att_scale = 1.0 / math.sqrt(HD)
    wqkv_l, wo_l, w1_l, w2_l, slab_l = [], [], [], [], []
    for _ in range(NLAYERS):
        wq, wk, wv = nrm((H, H)), nrm((H, H)), nrm((H, H))
        # fold the 1/sqrt(HD) attention scale into the query projection
        wqkv_l.append(jnp.concatenate([wq * att_scale, wk, wv], axis=1))  # (H, 3H)
        wo_l.append(nrm((H, H)))
        w1_l.append(nrm((H, I)))
        w2_l.append(nrm((I, H)))

        bq = nrm((H,), 0.01) * att_scale                       # scale folded into bq too
        bk = nrm((H,), 0.01)
        bv = nrm((H,), 0.01)
        slab = jnp.zeros((8, I), jnp.float32)
        slab = slab.at[ROW_BQKV, 0:3 * H].set(jnp.concatenate([bq, bk, bv]))
        slab = slab.at[ROW_BO, 0:H].set(nrm((H,), 0.01))
        slab = slab.at[ROW_LN1G, 0:H].set(1.0)
        # ROW_LN1B stays zero
        slab = slab.at[ROW_B1, 0:I].set(nrm((I,), 0.01))
        slab = slab.at[ROW_B2, 0:H].set(nrm((H,), 0.01))
        slab = slab.at[ROW_LN2G, 0:H].set(1.0)
        # ROW_LN2B stays zero
        slab_l.append(slab)

    # matmul weights feed the MXU in bf16 (f32 accumulation); small params stay f32
    params['wqkv'] = jnp.stack(wqkv_l).astype(jnp.bfloat16)   # (L, H, 3H)
    params['wo'] = jnp.stack(wo_l).astype(jnp.bfloat16)       # (L, H, H)
    params['w1'] = jnp.stack(w1_l).astype(jnp.bfloat16)       # (L, H, I)
    params['w2'] = jnp.stack(w2_l).astype(jnp.bfloat16)       # (L, I, H)
    params['slab'] = jnp.stack(slab_l)                        # (L, 8, I) f32
    return params


if __name__ == "__main__":
    key = jax.random.PRNGKey(0)
    pkey, ikey = jax.random.split(key)
    params = init_params(pkey)

    input_ids = jax.random.randint(ikey, (B, S), 0, VOCAB)
    # second sequence is padded: last two tokens masked out
    attention_mask = jnp.ones((B, S), jnp.int32).at[1, 6:].set(0)

    cls = senbert_encoder(input_ids, attention_mask, params)
    cls = jax.block_until_ready(cls)
    assert cls.shape == (B, H) and cls.dtype == jnp.float32
    assert bool(jnp.all(jnp.isfinite(cls)))
    print("KERNEL_OK")
</pallas_src>

<mosaic_0001>
module attributes {stable_mosaic.version = 11 : i64} {
  func.func @encoder_kernel(%arg0: i32, %arg1: i32, %arg2: memref<1x8x32xf32, #tpu.memory_space<vmem>>, %arg3: memref<1x1x8xf32, #tpu.memory_space<vmem>>, %arg4: memref<2x32xf32, #tpu.memory_space<vmem>>, %arg5: memref<1x32x96xbf16, #tpu.memory_space<vmem>>, %arg6: memref<1x32x32xbf16, #tpu.memory_space<vmem>>, %arg7: memref<1x32x128xbf16, #tpu.memory_space<vmem>>, %arg8: memref<1x128x32xbf16, #tpu.memory_space<vmem>>, %arg9: memref<1x8x128xf32, #tpu.memory_space<vmem>>, %arg10: memref<1x1x32xf32, #tpu.memory_space<vmem>>, %arg11: memref<8x32xf32, #tpu.memory_space<vmem>>) attributes {dimension_semantics = [#tpu.dimension_semantics<parallel>, #tpu.dimension_semantics<arbitrary>], iteration_bounds = array<i64: 2, 2>, scalar_prefetch = 0 : i64, scratch_operands = 1 : i64, tpu.core_type = #tpu.core_type<tc>, window_params = [{transform_indices = @transform_0, window_bounds = array<i64: 1, 8, 32>}, {transform_indices = @transform_1, window_bounds = array<i64: 1, 1, 8>}, {pipeline_mode = #tpu.pipeline_mode<synchronous>, transform_indices = @transform_2, window_bounds = array<i64: 2, 32>}, {transform_indices = @transform_3, window_bounds = array<i64: 1, 32, 96>}, {transform_indices = @transform_4, window_bounds = array<i64: 1, 32, 32>}, {transform_indices = @transform_5, window_bounds = array<i64: 1, 32, 128>}, {transform_indices = @transform_6, window_bounds = array<i64: 1, 128, 32>}, {transform_indices = @transform_7, window_bounds = array<i64: 1, 8, 128>}, {transform_indices = @transform_8, window_bounds = array<i64: 1, 1, 32>}]} {
    %c0_i32 = arith.constant 0 : i32
    %0 = arith.cmpi eq, %arg1, %c0_i32 : i32
    %1 = arith.extui %0 : i1 to i32
    %c0_i32_0 = arith.constant 0 : i32
    %2 = arith.cmpi ne, %1, %c0_i32_0 : i32
    scf.if %2 {
      %c0_44 = arith.constant 0 : index
      %c0_45 = arith.constant 0 : index
      %124 = vector.load %arg4[%c0_44, %c0_45] : memref<2x32xf32, #tpu.memory_space<vmem>>, vector<2x32xf32>
      %c0_46 = arith.constant 0 : index
      %c0_47 = arith.constant 0 : index
      %c0_48 = arith.constant 0 : index
      %125 = vector.load %arg2[%c0_46, %c0_47, %c0_48] : memref<1x8x32xf32, #tpu.memory_space<vmem>>, vector<1x8x32xf32>
      %126 = vector.shape_cast %125 : vector<1x8x32xf32> to vector<8x32xf32>
      %127 = vector.extract_strided_slice %124 {offsets = [0, 0], sizes = [1, 32], strides = [1, 1]} : vector<2x32xf32> to vector<1x32xf32>
      %128 = vector.extract_strided_slice %124 {offsets = [1, 0], sizes = [1, 32], strides = [1, 1]} : vector<2x32xf32> to vector<1x32xf32>
      %cst_49 = arith.constant dense<0.000000e+00> : vector<8xf32>
      %129 = vector.multi_reduction <add>, %126, %cst_49 [1] : vector<8x32xf32> to vector<8xf32>
      %130 = vector.shape_cast %129 : vector<8xf32> to vector<8x1xf32>
      %cst_50 = arith.constant 3.200000e+01 : f32
      %131 = vector.broadcast %cst_50 : f32 to vector<8x1xf32>
      %132 = arith.divf %130, %131 : vector<8x1xf32>
      %133 = vector.broadcast %132 : vector<8x1xf32> to vector<8x32xf32>
      %134 = arith.subf %126, %133 : vector<8x32xf32>
      %135 = arith.mulf %134, %134 : vector<8x32xf32>
      %cst_51 = arith.constant dense<0.000000e+00> : vector<8xf32>
      %136 = vector.multi_reduction <add>, %135, %cst_51 [1] : vector<8x32xf32> to vector<8xf32>
      %137 = vector.shape_cast %136 : vector<8xf32> to vector<8x1xf32>
      %cst_52 = arith.constant 3.200000e+01 : f32
      %138 = vector.broadcast %cst_52 : f32 to vector<8x1xf32>
      %139 = arith.divf %137, %138 : vector<8x1xf32>
      %cst_53 = arith.constant 9.99999996E-13 : f32
      %140 = vector.broadcast %cst_53 : f32 to vector<8x1xf32>
      %141 = arith.addf %139, %140 : vector<8x1xf32>
      %142 = math.rsqrt %141 : vector<8x1xf32>
      %143 = vector.broadcast %142 : vector<8x1xf32> to vector<8x32xf32>
      %144 = arith.mulf %134, %143 : vector<8x32xf32>
      %145 = vector.broadcast %127 : vector<1x32xf32> to vector<8x32xf32>
      %146 = arith.mulf %144, %145 : vector<8x32xf32>
      %147 = vector.broadcast %128 : vector<1x32xf32> to vector<8x32xf32>
      %148 = arith.addf %146, %147 : vector<8x32xf32>
      %c0_54 = arith.constant 0 : index
      %c0_55 = arith.constant 0 : index
      %149 = vector.load %arg11[%c0_54, %c0_55] : memref<8x32xf32, #tpu.memory_space<vmem>>, vector<8x32xf32>
      tpu.vector_store %arg11[%c0_54, %c0_55], %148 {strides = array<i32>} : memref<8x32xf32, #tpu.memory_space<vmem>>, vector<8x32xf32>,
    } else {
    }
    %c0 = arith.constant 0 : index
    %c0_1 = arith.constant 0 : index
    %c0_2 = arith.constant 0 : index
    %3 = vector.load %arg5[%c0, %c0_1, %c0_2] : memref<1x32x96xbf16, #tpu.memory_space<vmem>>, vector<1x32x96xbf16>
    %4 = vector.shape_cast %3 : vector<1x32x96xbf16> to vector<32x96xbf16>
    %c0_3 = arith.constant 0 : index
    %c0_4 = arith.constant 0 : index
    %c0_5 = arith.constant 0 : index
    %5 = vector.load %arg6[%c0_3, %c0_4, %c0_5] : memref<1x32x32xbf16, #tpu.memory_space<vmem>>, vector<1x32x32xbf16>
    %6 = vector.shape_cast %5 : vector<1x32x32xbf16> to vector<32x32xbf16>
    %c0_6 = arith.constant 0 : index
    %c0_7 = arith.constant 0 : index
    %c0_8 = arith.constant 0 : index
    %7 = vector.load %arg7[%c0_6, %c0_7, %c0_8] : memref<1x32x128xbf16, #tpu.memory_space<vmem>>, vector<1x32x128xbf16>
    %8 = vector.shape_cast %7 : vector<1x32x128xbf16> to vector<32x128xbf16>
    %c0_9 = arith.constant 0 : index
    %c0_10 = arith.constant 0 : index
    %c0_11 = arith.constant 0 : index
    %9 = vector.load %arg8[%c0_9, %c0_10, %c0_11] : memref<1x128x32xbf16, #tpu.memory_space<vmem>>, vector<1x128x32xbf16>
    %10 = vector.shape_cast %9 : vector<1x128x32xbf16> to vector<128x32xbf16>
    %c0_12 = arith.constant 0 : index
    %c0_13 = arith.constant 0 : index
    %c0_14 = arith.constant 0 : index
    %11 = vector.load %arg9[%c0_12, %c0_13, %c0_14] : memref<1x8x128xf32, #tpu.memory_space<vmem>>, vector<1x8x128xf32>
    %12 = vector.shape_cast %11 : vector<1x8x128xf32> to vector<8x128xf32>
    %13 = vector.extract_strided_slice %12 {offsets = [0, 0], sizes = [1, 96], strides = [1, 1]} : vector<8x128xf32> to vector<1x96xf32>
    %14 = vector.extract_strided_slice %12 {offsets = [1, 0], sizes = [1, 32], strides = [1, 1]} : vector<8x128xf32> to vector<1x32xf32>
    %15 = vector.extract_strided_slice %12 {offsets = [2, 0], sizes = [1, 32], strides = [1, 1]} : vector<8x128xf32> to vector<1x32xf32>
    %16 = vector.extract_strided_slice %12 {offsets = [3, 0], sizes = [1, 32], strides = [1, 1]} : vector<8x128xf32> to vector<1x32xf32>
    %17 = vector.extract_strided_slice %12 {offsets = [4, 0], sizes = [1, 128], strides = [1, 1]} : vector<8x128xf32> to vector<1x128xf32>
    %18 = vector.extract_strided_slice %12 {offsets = [5, 0], sizes = [1, 32], strides = [1, 1]} : vector<8x128xf32> to vector<1x32xf32>
    %19 = vector.extract_strided_slice %12 {offsets = [6, 0], sizes = [1, 32], strides = [1, 1]} : vector<8x128xf32> to vector<1x32xf32>
    %20 = vector.extract_strided_slice %12 {offsets = [7, 0], sizes = [1, 32], strides = [1, 1]} : vector<8x128xf32> to vector<1x32xf32>
    %c0_15 = arith.constant 0 : index
    %c0_16 = arith.constant 0 : index
    %21 = vector.load %arg11[%c0_15, %c0_16] : memref<8x32xf32, #tpu.memory_space<vmem>>, vector<8x32xf32>
    %c0_17 = arith.constant 0 : index
    %c0_18 = arith.constant 0 : index
    %c0_19 = arith.constant 0 : index
    %22 = vector.load %arg3[%c0_17, %c0_18, %c0_19] : memref<1x1x8xf32, #tpu.memory_space<vmem>>, vector<1x1x8xf32>
    %23 = vector.shape_cast %22 : vector<1x1x8xf32> to vector<1x8xf32>
    %24 = arith.truncf %21 : vector<8x32xf32> to vector<8x32xbf16>
    %cst = arith.constant dense<0.000000e+00> : vector<8x96xf32>
    %25 = tpu.matmul %24, %4, %cst {dimension_numbers = #tpu.dot_dimension_numbers<[1], [0], [0], [1], [0, 0, 1, 1], [], []>} : vector<8x32xbf16>, vector<32x96xbf16>, vector<8x96xf32> -> vector<8x96xf32>
    %26 = vector.broadcast %13 : vector<1x96xf32> to vector<8x96xf32>
    %27 = arith.addf %25, %26 : vector<8x96xf32>
    %28 = arith.truncf %27 : vector<8x96xf32> to vector<8x96xbf16>
    %29 = vector.extract_strided_slice %28 {offsets = [0, 0], sizes = [8, 32], strides = [1, 1]} : vector<8x96xbf16> to vector<8x32xbf16>
    %30 = vector.shape_cast %29 : vector<8x32xbf16> to vector<8x4x8xbf16>
    %31 = vector.extract_strided_slice %28 {offsets = [0, 32], sizes = [8, 32], strides = [1, 1]} : vector<8x96xbf16> to vector<8x32xbf16>
    %32 = vector.shape_cast %31 : vector<8x32xbf16> to vector<8x4x8xbf16>
    %33 = vector.extract_strided_slice %28 {offsets = [0, 64], sizes = [8, 32], strides = [1, 1]} : vector<8x96xbf16> to vector<8x32xbf16>
    %34 = vector.shape_cast %33 : vector<8x32xbf16> to vector<8x4x8xbf16>
    "tpu.trace_start"() <{level = 10 : i32, message = "qhd,khd->hqk"}> : () -> ()
    %cst_20 = arith.constant dense<0.000000e+00> : vector<4x8x8xf32>
    %35 = tpu.matmul %30, %32, %cst_20 {dimension_numbers = #tpu.dot_dimension_numbers<[2], [2], [0], [0], [0, 1, 0, 0, 1, 0], [1], [1]>} : vector<8x4x8xbf16>, vector<8x4x8xbf16>, vector<4x8x8xf32> -> vector<4x8x8xf32>
    "tpu.trace_stop"() : () -> ()
    %36 = vector.shape_cast %23 : vector<1x8xf32> to vector<1x1x8xf32>
    %37 = vector.broadcast %36 : vector<1x1x8xf32> to vector<4x8x8xf32>
    %38 = arith.addf %35, %37 : vector<4x8x8xf32>
    %cst_21 = arith.constant dense<0xFF800000> : vector<4x8xf32>
    %39 = vector.multi_reduction <maximumf>, %38, %cst_21 [2] : vector<4x8x8xf32> to vector<4x8xf32>
    %40 = vector.shape_cast %39 : vector<4x8xf32> to vector<4x8x1xf32>
    %41 = vector.broadcast %40 : vector<4x8x1xf32> to vector<4x8x8xf32>
    %42 = arith.subf %38, %41 : vector<4x8x8xf32>
    %43 = math.exp %42 : vector<4x8x8xf32>
    %cst_22 = arith.constant dense<0.000000e+00> : vector<4x8xf32>
    %44 = vector.multi_reduction <add>, %43, %cst_22 [2] : vector<4x8x8xf32> to vector<4x8xf32>
    %45 = vector.shape_cast %44 : vector<4x8xf32> to vector<4x8x1xf32>
    %46 = tpu.reciprocal %45 {approx = true} : vector<4x8x1xf32> -> vector<4x8x1xf32>
    %47 = vector.broadcast %46 : vector<4x8x1xf32> to vector<4x8x8xf32>
    %48 = arith.mulf %43, %47 : vector<4x8x8xf32>
    %49 = arith.truncf %48 : vector<4x8x8xf32> to vector<4x8x8xbf16>
    "tpu.trace_start"() <{level = 10 : i32, message = "hqk,khd->qhd"}> : () -> ()
    %cst_23 = arith.constant dense<0.000000e+00> : vector<4x8x8xf32>
    %50 = tpu.matmul %34, %49, %cst_23 {dimension_numbers = #tpu.dot_dimension_numbers<[0], [2], [2], [1], [0, 1, 0, 2, 1, 1], [1], [0]>} : vector<8x4x8xbf16>, vector<4x8x8xbf16>, vector<4x8x8xf32> -> vector<4x8x8xf32>
    %51 = tpu.transpose %50, [2, 0, 1] : vector<4x8x8xf32> -> vector<8x4x8xf32>
    "tpu.trace_stop"() : () -> ()
    %52 = vector.shape_cast %51 : vector<8x4x8xf32> to vector<8x32xf32>
    %53 = arith.truncf %52 : vector<8x32xf32> to vector<8x32xbf16>
    %cst_24 = arith.constant dense<0.000000e+00> : vector<8x32xf32>
    %54 = tpu.matmul %53, %6, %cst_24 {dimension_numbers = #tpu.dot_dimension_numbers<[1], [0], [0], [1], [0, 0, 1, 1], [], []>} : vector<8x32xbf16>, vector<32x32xbf16>, vector<8x32xf32> -> vector<8x32xf32>
    %55 = vector.broadcast %14 : vector<1x32xf32> to vector<8x32xf32>
    %56 = arith.addf %54, %55 : vector<8x32xf32>
    %57 = arith.addf %21, %56 : vector<8x32xf32>
    %cst_25 = arith.constant dense<0.000000e+00> : vector<8xf32>
    %58 = vector.multi_reduction <add>, %57, %cst_25 [1] : vector<8x32xf32> to vector<8xf32>
    %59 = vector.shape_cast %58 : vector<8xf32> to vector<8x1xf32>
    %cst_26 = arith.constant 3.200000e+01 : f32
    %60 = vector.broadcast %cst_26 : f32 to vector<8x1xf32>
    %61 = arith.divf %59, %60 : vector<8x1xf32>
    %62 = vector.broadcast %61 : vector<8x1xf32> to vector<8x32xf32>
    %63 = arith.subf %57, %62 : vector<8x32xf32>
    %64 = arith.mulf %63, %63 : vector<8x32xf32>
    %cst_27 = arith.constant dense<0.000000e+00> : vector<8xf32>
    %65 = vector.multi_reduction <add>, %64, %cst_27 [1] : vector<8x32xf32> to vector<8xf32>
    %66 = vector.shape_cast %65 : vector<8xf32> to vector<8x1xf32>
    %cst_28 = arith.constant 3.200000e+01 : f32
    %67 = vector.broadcast %cst_28 : f32 to vector<8x1xf32>
    %68 = arith.divf %66, %67 : vector<8x1xf32>
    %cst_29 = arith.constant 9.99999996E-13 : f32
    %69 = vector.broadcast %cst_29 : f32 to vector<8x1xf32>
    %70 = arith.addf %68, %69 : vector<8x1xf32>
    %71 = math.rsqrt %70 : vector<8x1xf32>
    %72 = vector.broadcast %71 : vector<8x1xf32> to vector<8x32xf32>
    %73 = arith.mulf %63, %72 : vector<8x32xf32>
    %74 = vector.broadcast %15 : vector<1x32xf32> to vector<8x32xf32>
    %75 = arith.mulf %73, %74 : vector<8x32xf32>
    %76 = vector.broadcast %16 : vector<1x32xf32> to vector<8x32xf32>
    %77 = arith.addf %75, %76 : vector<8x32xf32>
    %78 = arith.truncf %77 : vector<8x32xf32> to vector<8x32xbf16>
    %cst_30 = arith.constant dense<0.000000e+00> : vector<8x128xf32>
    %79 = tpu.matmul %78, %8, %cst_30 {dimension_numbers = #tpu.dot_dimension_numbers<[1], [0], [0], [1], [0, 0, 1, 1], [], []>} : vector<8x32xbf16>, vector<32x128xbf16>, vector<8x128xf32> -> vector<8x128xf32>
    %80 = vector.broadcast %17 : vector<1x128xf32> to vector<8x128xf32>
    %81 = arith.addf %79, %80 : vector<8x128xf32>
    %cst_31 = arith.constant 5.000000e-01 : f32
    %82 = vector.broadcast %cst_31 : f32 to vector<8x128xf32>
    %83 = arith.mulf %82, %81 : vector<8x128xf32>
    %cst_32 = arith.constant 4.471500e-02 : f32
    %84 = vector.broadcast %cst_32 : f32 to vector<8x128xf32>
    %85 = arith.mulf %84, %81 : vector<8x128xf32>
    %86 = arith.mulf %85, %81 : vector<8x128xf32>
    %87 = arith.mulf %86, %81 : vector<8x128xf32>
    %88 = arith.addf %81, %87 : vector<8x128xf32>
    %cst_33 = arith.constant 0.797884583 : f32
    %89 = vector.broadcast %cst_33 : f32 to vector<8x128xf32>
    %90 = arith.mulf %89, %88 : vector<8x128xf32>
    %91 = math.tanh %90 : vector<8x128xf32>
    %cst_34 = arith.constant 1.000000e+00 : f32
    %92 = vector.broadcast %cst_34 : f32 to vector<8x128xf32>
    %93 = arith.addf %92, %91 : vector<8x128xf32>
    %94 = arith.mulf %83, %93 : vector<8x128xf32>
    %95 = arith.truncf %94 : vector<8x128xf32> to vector<8x128xbf16>
    %cst_35 = arith.constant dense<0.000000e+00> : vector<8x32xf32>
    %96 = tpu.matmul %95, %10, %cst_35 {dimension_numbers = #tpu.dot_dimension_numbers<[1], [0], [0], [1], [0, 0, 1, 1], [], []>} : vector<8x128xbf16>, vector<128x32xbf16>, vector<8x32xf32> -> vector<8x32xf32>
    %97 = vector.broadcast %18 : vector<1x32xf32> to vector<8x32xf32>
    %98 = arith.addf %96, %97 : vector<8x32xf32>
    %99 = arith.addf %77, %98 : vector<8x32xf32>
    %cst_36 = arith.constant dense<0.000000e+00> : vector<8xf32>
    %100 = vector.multi_reduction <add>, %99, %cst_36 [1] : vector<8x32xf32> to vector<8xf32>
    %101 = vector.shape_cast %100 : vector<8xf32> to vector<8x1xf32>
    %cst_37 = arith.constant 3.200000e+01 : f32
    %102 = vector.broadcast %cst_37 : f32 to vector<8x1xf32>
    %103 = arith.divf %101, %102 : vector<8x1xf32>
    %104 = vector.broadcast %103 : vector<8x1xf32> to vector<8x32xf32>
    %105 = arith.subf %99, %104 : vector<8x32xf32>
    %106 = arith.mulf %105, %105 : vector<8x32xf32>
    %cst_38 = arith.constant dense<0.000000e+00> : vector<8xf32>
    %107 = vector.multi_reduction <add>, %106, %cst_38 [1] : vector<8x32xf32> to vector<8xf32>
    %108 = vector.shape_cast %107 : vector<8xf32> to vector<8x1xf32>
    %cst_39 = arith.constant 3.200000e+01 : f32
    %109 = vector.broadcast %cst_39 : f32 to vector<8x1xf32>
    %110 = arith.divf %108, %109 : vector<8x1xf32>
    %cst_40 = arith.constant 9.99999996E-13 : f32
    %111 = vector.broadcast %cst_40 : f32 to vector<8x1xf32>
    %112 = arith.addf %110, %111 : vector<8x1xf32>
    %113 = math.rsqrt %112 : vector<8x1xf32>
    %114 = vector.broadcast %113 : vector<8x1xf32> to vector<8x32xf32>
    %115 = arith.mulf %105, %114 : vector<8x32xf32>
    %116 = vector.broadcast %19 : vector<1x32xf32> to vector<8x32xf32>
    %117 = arith.mulf %115, %116 : vector<8x32xf32>
    %118 = vector.broadcast %20 : vector<1x32xf32> to vector<8x32xf32>
    %119 = arith.addf %117, %118 : vector<8x32xf32>
    %c0_41 = arith.constant 0 : index
    %c0_42 = arith.constant 0 : index
    %120 = vector.load %arg11[%c0_41, %c0_42] : memref<8x32xf32, #tpu.memory_space<vmem>>, vector<8x32xf32>
    tpu.vector_store %arg11[%c0_41, %c0_42], %119 {strides = array<i32>} : memref<8x32xf32, #tpu.memory_space<vmem>>, vector<8x32xf32>,
    %c1_i32 = arith.constant 1 : i32
    %121 = arith.cmpi eq, %arg1, %c1_i32 : i32
    %122 = arith.extui %121 : i1 to i32
    %c0_i32_43 = arith.constant 0 : i32
    %123 = arith.cmpi ne, %122, %c0_i32_43 : i32
    scf.if %123 {
      %c0_44 = arith.constant 0 : index
      %c0_45 = arith.constant 0 : index
      %124 = vector.load %arg11[%c0_44, %c0_45] : memref<8x32xf32, #tpu.memory_space<vmem>>, vector<1x32xf32>
      %c0_46 = arith.constant 0 : index
      %c0_47 = arith.constant 0 : index
      %c0_48 = arith.constant 0 : index
      %125 = vector.load %arg10[%c0_46, %c0_47, %c0_48] : memref<1x1x32xf32, #tpu.memory_space<vmem>>, vector<1x1x32xf32>
      %126 = vector.shape_cast %125 : vector<1x1x32xf32> to vector<1x32xf32>
      %127 = vector.shape_cast %124 : vector<1x32xf32> to vector<1x1x32xf32>
      tpu.vector_store %arg10[%c0_46, %c0_47, %c0_48], %127 {strides = array<i32>} : memref<1x1x32xf32, #tpu.memory_space<vmem>>, vector<1x1x32xf32>,
    } else {
    }
    return
  }
  func.func @transform_0(%arg0: i32, %arg1: i32) -> (i32, i32, i32) {
    %c0_i32 = arith.constant 0 : i32
    %c0_i32_0 = arith.constant 0 : i32
    %c0_i32_1 = arith.constant 0 : i32
    return %arg0, %c0_i32, %c0_i32_0 : i32, i32, i32
  }
  func.func @transform_1(%arg0: i32, %arg1: i32) -> (i32, i32, i32) {
    %c0_i32 = arith.constant 0 : i32
    %c0_i32_0 = arith.constant 0 : i32
    %c0_i32_1 = arith.constant 0 : i32
    return %arg0, %c0_i32, %c0_i32_0 : i32, i32, i32
  }
  func.func @transform_2(%arg0: i32, %arg1: i32) -> (i32, i32) {
    %c0_i32 = arith.constant 0 : i32
    %c0_i32_0 = arith.constant 0 : i32
    %c0_i32_1 = arith.constant 0 : i32
    return %c0_i32, %c0_i32_0 : i32, i32
  }
  func.func @transform_3(%arg0: i32, %arg1: i32) -> (i32, i32, i32) {
    %c0_i32 = arith.constant 0 : i32
    %c0_i32_0 = arith.constant 0 : i32
    %c0_i32_1 = arith.constant 0 : i32
    return %arg1, %c0_i32, %c0_i32_0 : i32, i32, i32
  }
  func.func @transform_4(%arg0: i32, %arg1: i32) -> (i32, i32, i32) {
    %c0_i32 = arith.constant 0 : i32
    %c0_i32_0 = arith.constant 0 : i32
    %c0_i32_1 = arith.constant 0 : i32
    return %arg1, %c0_i32, %c0_i32_0 : i32, i32, i32
  }
  func.func @transform_5(%arg0: i32, %arg1: i32) -> (i32, i32, i32) {
    %c0_i32 = arith.constant 0 : i32
    %c0_i32_0 = arith.constant 0 : i32
    %c0_i32_1 = arith.constant 0 : i32
    return %arg1, %c0_i32, %c0_i32_0 : i32, i32, i32
  }
  func.func @transform_6(%arg0: i32, %arg1: i32) -> (i32, i32, i32) {
    %c0_i32 = arith.constant 0 : i32
    %c0_i32_0 = arith.constant 0 : i32
    %c0_i32_1 = arith.constant 0 : i32
    return %arg1, %c0_i32, %c0_i32_0 : i32, i32, i32
  }
  func.func @transform_7(%arg0: i32, %arg1: i32) -> (i32, i32, i32) {
    %c0_i32 = arith.constant 0 : i32
    %c0_i32_0 = arith.constant 0 : i32
    %c0_i32_1 = arith.constant 0 : i32
    return %arg1, %c0_i32, %c0_i32_0 : i32, i32, i32
  }
  func.func @transform_8(%arg0: i32, %arg1: i32) -> (i32, i32, i32) {
    %c0_i32 = arith.constant 0 : i32
    %c0_i32_0 = arith.constant 0 : i32
    %c0_i32_1 = arith.constant 0 : i32
    return %arg0, %c0_i32, %c0_i32_0 : i32, i32, i32
  }
}

</mosaic_0001>

<llo_original>
// kernel: tpu_custom_call.1
$region0: #{tpu_custom_call.1}
  #allocation0 [shape = 'u32[]', space=smem, size = 0x4, offset = 0x4, fixed_abs, tag = 'smem constant byte address 0x4 - core index']
  #allocation1 [shape = 'u32[72,128]{1,0:T(1,128)}', space=vmem, size = 0x9000, scoped, tag = 'internal scratch']
  #allocation2 [shape = 'f32[8,32]{1,0:T(8,128)}', space=vmem, size = 0x1000, scoped, tag = 'scratch operand']
  %s0 = inlined_call_operand.vmem [shape: f32[2,8,32], index: 0, kind: input, shape index: {}]
  %s1 = inlined_call_operand.vmem [shape: f32[2,1,8], index: 1, kind: input, shape index: {}]
  %s2 = inlined_call_operand.vmem [shape: f32[2,32], index: 2, kind: input, shape index: {}]
  %s3 = inlined_call_operand.vmem [shape: bf16[2,32,96], index: 3, kind: input, shape index: {}]
  %s4 = inlined_call_operand.vmem [shape: bf16[2,32,32], index: 4, kind: input, shape index: {}]
  %s5 = inlined_call_operand.vmem [shape: bf16[2,32,128], index: 5, kind: input, shape index: {}]
  %s6 = inlined_call_operand.vmem [shape: bf16[2,128,32], index: 6, kind: input, shape index: {}]
  %s7 = inlined_call_operand.vmem [shape: f32[2,8,128], index: 7, kind: input, shape index: {}]
  %s8 = inlined_call_operand.hbm [shape: f32[2,1,32], index: 8, kind: output, shape index: {}]
  %s9 = sld [smem:[#allocation0]]
  $region73: #{tpu_custom_call.1} parent=0
    _
  %s11 = ssub.s32 1, %s9
  %s12 = scalar_select 0, %s11, %s9
  $region1: #{tpu_custom_call.1} parent=0
    #allocation3 [shape = 'u8[1024]{0}', space=vmem, size = 0x400, scoped, tag = 'output window, operand 0']
    #allocation4 [shape = 's32[2]{0}', space=sflag, size = 0x8, scoped, tag = 'scoped memory for tpu_custom_call.1']
    %13 = vsyncpa [#allocation4], 0
    %s14 = scalar_lea.sflag [#allocation4], 1
    %15 = vsyncpa %s14, 0
    loop: start=0, step=1, limit=6
    $region2: #{tpu_custom_call.1} parent=1 // loop_pre_header
      _
    $region3: #{tpu_custom_call.1} parent=1 // loop_header
      %s17 = sphi 0, %s21
      %p18 = scmp.ge.s32.totalorder %s17, 6
      %s24 = sphi 0, %s36
      %s25 = sphi 0, %s32
      %s26 = sphi 0, %s24
      %s27 = sphi 0, %s25
      %s28 = sphi 0, %s26
      %s29 = sphi 0, %s27
      %s39 = sphi 0, %s41
      %s42 = sphi 0, %s39
      %s43 = sphi 0, %s42
      %s59 = sphi 0, %s43
      %s65 = sphi 0, %s67
      %s68 = sphi 0, %s65
      %s69 = sphi 0, %s68
      %s85 = sphi 0, %s69
      %s89 = sphi 0, %s89
      %s91 = sphi 0, %s89
      %s92 = sphi 0, %s91
      %s106 = sphi 0, %s92
      %s112 = sphi 0, %s114
      %s115 = sphi 0, %s112
      %s116 = sphi 0, %s115
      %s132 = sphi 0, %s116
      %s138 = sphi 0, %s140
      %s141 = sphi 0, %s138
      %s142 = sphi 0, %s141
      %s158 = sphi 0, %s142
      %s164 = sphi 0, %s166
      %s167 = sphi 0, %s164
      %s168 = sphi 0, %s167
      %s184 = sphi 0, %s168
      %s190 = sphi 0, %s192
      %s193 = sphi 0, %s190
      %s194 = sphi 0, %s193
      %s210 = sphi 0, %s194
      %s216 = sphi 0, %s218
      %s219 = sphi 0, %s216
      %s220 = sphi 0, %s219
      %s236 = sphi 0, %s220
      %s242 = sphi 0, %s244
      %s245 = sphi 0, %s242
      %s246 = sphi 0, %s245
      %s262 = sphi 0, %s246
    $region4: #{tpu_custom_call.1} parent=1 // loop_header_branch
      %20 = sbr.rel (%p18) target = $region8
    $region5: #{tpu_custom_call.1} parent=1 // loop_body
      %s22 = ssub.s32 %s17, 1
      %s23 = ssub.s32 %s17, 2
      %s30 = sadd.s32 1, %s25
      %p31 = scmp.ge.s32.totalorder %s30, 2
      %s32 = scalar_select %p31, 0, %s30
      %s33 = sadd.s32 1, %s24
      %s34 = scalar_select %p31, %s33, %s24
      %p35 = scmp.ge.s32.totalorder %s34, 2
      %s36 = scalar_select %p35, 0, %s34
      %s37 = ssub.s32 %s24, %s36
      %p38 = scmp.eq.s32.totalorder %s37, 0
      %s40 = sadd.s32 %s39, 1
      %s41 = scalar_select %p38, %s39, %s40
      %p44 = pneg %p38
      %p45 = scmp.eq.s32.totalorder %s17, 3
      %p46 = por %p44, %p45
      %p47 = scmp.ne.s32.totalorder %s39, %s42
      %p48 = scmp.eq.s32.totalorder %s17, 0
      %p49 = por %p47, %p48
      %p50 = scmp.ne.s32.totalorder %s39, %s42
      %p51 = scmp.eq.s32.totalorder %s22, 3
      %p52 = por %p50, %p51
      %p53 = scmp.ne.s32.totalorder %s42, %s43
      %p54 = scmp.eq.s32.totalorder %s22, 0
      %p55 = por %p53, %p54
      %p56 = scmp.ne.s32.totalorder %s42, %s43
      %p57 = scmp.eq.s32.totalorder %s23, 3
      %p58 = por %p56, %p57
      %p60 = scmp.ne.s32.totalorder %s43, %s59
      %p61 = scmp.eq.s32.totalorder %s23, 0
      %p62 = por %p60, %p61
      %s63 = ssub.s32 %s24, %s36
      %p64 = scmp.eq.s32.totalorder %s63, 0
      %s66 = sadd.s32 %s65, 1
      %s67 = scalar_select %p64, %s65, %s66
      %p70 = pneg %p64
      %p71 = scmp.eq.s32.totalorder %s17, 3
      %p72 = por %p70, %p71
      %p73 = scmp.ne.s32.totalorder %s65, %s68
      %p74 = scmp.eq.s32.totalorder %s17, 0
      %p75 = por %p73, %p74
      %p76 = scmp.ne.s32.totalorder %s65, %s68
      %p77 = scmp.eq.s32.totalorder %s22, 3
      %p78 = por %p76, %p77
      %p79 = scmp.ne.s32.totalorder %s68, %s69
      %p80 = scmp.eq.s32.totalorder %s22, 0
      %p81 = por %p79, %p80
      %p82 = scmp.ne.s32.totalorder %s68, %s69
      %p83 = scmp.eq.s32.totalorder %s23, 3
      %p84 = por %p82, %p83
      %p86 = scmp.ne.s32.totalorder %s69, %s85
      %p87 = scmp.eq.s32.totalorder %s23, 0
      %p88 = por %p86, %p87
      %s90 = sadd.s32 %s89, 1
      %p93 = scmp.eq.s32.totalorder %s17, 3
      %p94 = scmp.ne.s32.totalorder %s89, %s91
      %p95 = scmp.eq.s32.totalorder %s17, 0
      %p96 = por %p94, %p95
      %p97 = scmp.ne.s32.totalorder %s89, %s91
      %p98 = scmp.eq.s32.totalorder %s22, 3
      %p99 = por %p97, %p98
      %p100 = scmp.ne.s32.totalorder %s91, %s92
      %p101 = scmp.eq.s32.totalorder %s22, 0
      %p102 = por %p100, %p101
      %p103 = scmp.ne.s32.totalorder %s91, %s92
      %p104 = scmp.eq.s32.totalorder %s23, 3
      %p105 = por %p103, %p104
      %p107 = scmp.ne.s32.totalorder %s92, %s106
      %p108 = scmp.eq.s32.totalorder %s23, 0
      %p109 = por %p107, %p108
      %s110 = ssub.s32 %s25, %s32
      %p111 = scmp.eq.s32.totalorder %s110, 0
      %s113 = sadd.s32 %s112, 1
      %s114 = scalar_select %p111, %s112, %s113
      %p117 = pneg %p111
      %p118 = scmp.eq.s32.totalorder %s17, 3
      %p119 = por %p117, %p118
      %p120 = scmp.ne.s32.totalorder %s112, %s115
      %p121 = scmp.eq.s32.totalorder %s17, 0
      %p122 = por %p120, %p121
      %p123 = scmp.ne.s32.totalorder %s112, %s115
      %p124 = scmp.eq.s32.totalorder %s22, 3
      %p125 = por %p123, %p124
      %p126 = scmp.ne.s32.totalorder %s115, %s116
      %p127 = scmp.eq.s32.totalorder %s22, 0
      %p128 = por %p126, %p127
      %p129 = scmp.ne.s32.totalorder %s115, %s116
      %p130 = scmp.eq.s32.totalorder %s23, 3
      %p131 = por %p129, %p130
      %p133 = scmp.ne.s32.totalorder %s116, %s132
      %p134 = scmp.eq.s32.totalorder %s23, 0
      %p135 = por %p133, %p134
      %s136 = ssub.s32 %s25, %s32
      %p137 = scmp.eq.s32.totalorder %s136, 0
      %s139 = sadd.s32 %s138, 1
      %s140 = scalar_select %p137, %s138, %s139
      %p143 = pneg %p137
      %p144 = scmp.eq.s32.totalorder %s17, 3
      %p145 = por %p143, %p144
      %p146 = scmp.ne.s32.totalorder %s138, %s141
      %p147 = scmp.eq.s32.totalorder %s17, 0
      %p148 = por %p146, %p147
      %p149 = scmp.ne.s32.totalorder %s138, %s141
      %p150 = scmp.eq.s32.totalorder %s22, 3
      %p151 = por %p149, %p150
      %p152 = scmp.ne.s32.totalorder %s141, %s142
      %p153 = scmp.eq.s32.totalorder %s22, 0
      %p154 = por %p152, %p153
      %p155 = scmp.ne.s32.totalorder %s141, %s142
      %p156 = scmp.eq.s32.totalorder %s23, 3
      %p157 = por %p155, %p156
      %p159 = scmp.ne.s32.totalorder %s142, %s158
      %p160 = scmp.eq.s32.totalorder %s23, 0
      %p161 = por %p159, %p160
      %s162 = ssub.s32 %s25, %s32
      %p163 = scmp.eq.s32.totalorder %s162, 0
      %s165 = sadd.s32 %s164, 1
      %s166 = scalar_select %p163, %s164, %s165
      %p169 = pneg %p163
      %p170 = scmp.eq.s32.totalorder %s17, 3
      %p171 = por %p169, %p170
      %p172 = scmp.ne.s32.totalorder %s164, %s167
      %p173 = scmp.eq.s32.totalorder %s17, 0
      %p174 = por %p172, %p173
      %p175 = scmp.ne.s32.totalorder %s164, %s167
      %p176 = scmp.eq.s32.totalorder %s22, 3
      %p177 = por %p175, %p176
      %p178 = scmp.ne.s32.totalorder %s167, %s168
      %p179 = scmp.eq.s32.totalorder %s22, 0
      %p180 = por %p178, %p179
      %p181 = scmp.ne.s32.totalorder %s167, %s168
      %p182 = scmp.eq.s32.totalorder %s23, 3
      %p183 = por %p181, %p182
      %p185 = scmp.ne.s32.totalorder %s168, %s184
      %p186 = scmp.eq.s32.totalorder %s23, 0
      %p187 = por %p185, %p186
      %s188 = ssub.s32 %s25, %s32
      %p189 = scmp.eq.s32.totalorder %s188, 0
      %s191 = sadd.s32 %s190, 1
      %s192 = scalar_select %p189, %s190, %s191
      %p195 = pneg %p189
      %p196 = scmp.eq.s32.totalorder %s17, 3
      %p197 = por %p195, %p196
      %p198 = scmp.ne.s32.totalorder %s190, %s193
      %p199 = scmp.eq.s32.totalorder %s17, 0
      %p200 = por %p198, %p199
      %p201 = scmp.ne.s32.totalorder %s190, %s193
      %p202 = scmp.eq.s32.totalorder %s22, 3
      %p203 = por %p201, %p202
      %p204 = scmp.ne.s32.totalorder %s193, %s194
      %p205 = scmp.eq.s32.totalorder %s22, 0
      %p206 = por %p204, %p205
      %p207 = scmp.ne.s32.totalorder %s193, %s194
      %p208 = scmp.eq.s32.totalorder %s23, 3
      %p209 = por %p207, %p208
      %p211 = scmp.ne.s32.totalorder %s194, %s210
      %p212 = scmp.eq.s32.totalorder %s23, 0
      %p213 = por %p211, %p212
      %s214 = ssub.s32 %s25, %s32
      %p215 = scmp.eq.s32.totalorder %s214, 0
      %s217 = sadd.s32 %s216, 1
      %s218 = scalar_select %p215, %s216, %s217
      %p221 = pneg %p215
      %p222 = scmp.eq.s32.totalorder %s17, 3
      %p223 = por %p221, %p222
      %p224 = scmp.ne.s32.totalorder %s216, %s219
      %p225 = scmp.eq.s32.totalorder %s17, 0
      %p226 = por %p224, %p225
      %p227 = scmp.ne.s32.totalorder %s216, %s219
      %p228 = scmp.eq.s32.totalorder %s22, 3
      %p229 = por %p227, %p228
      %p230 = scmp.ne.s32.totalorder %s219, %s220
      %p231 = scmp.eq.s32.totalorder %s22, 0
      %p232 = por %p230, %p231
      %p233 = scmp.ne.s32.totalorder %s219, %s220
      %p234 = scmp.eq.s32.totalorder %s23, 3
      %p235 = por %p233, %p234
      %p237 = scmp.ne.s32.totalorder %s220, %s236
      %p238 = scmp.eq.s32.totalorder %s23, 0
      %p239 = por %p237, %p238
      %s240 = ssub.s32 %s24, %s36
      %p241 = scmp.eq.s32.totalorder %s240, 0
      %s243 = sadd.s32 %s242, 1
      %s244 = scalar_select %p241, %s242, %s243
      %p247 = pneg %p241
      %p248 = scmp.eq.s32.totalorder %s17, 3
      %p249 = por %p247, %p248
      %p250 = scmp.ne.s32.totalorder %s242, %s245
      %p251 = scmp.eq.s32.totalorder %s17, 0
      %p252 = por %p250, %p251
      %p253 = scmp.ne.s32.totalorder %s242, %s245
      %p254 = scmp.eq.s32.totalorder %s22, 3
      %p255 = por %p253, %p254
      %p256 = scmp.ne.s32.totalorder %s245, %s246
      %p257 = scmp.eq.s32.totalorder %s22, 0
      %p258 = por %p256, %p257
      %p259 = scmp.ne.s32.totalorder %s245, %s246
      %p260 = scmp.eq.s32.totalorder %s23, 3
      %p261 = por %p259, %p260
      %p263 = scmp.ne.s32.totalorder %s246, %s262
      %p264 = scmp.eq.s32.totalorder %s23, 0
      %p265 = por %p263, %p264
      %p266 = scmp.le.s32.totalorder 1, %s17
      %p267 = scmp.lt.s32.totalorder %s17, 5
      %p268 = pnand %p266, %p267
      %p269 = pneg %p268
      // Predicated region
      $region9: #{tpu_custom_call.1} parent=5 // pred_check
        _
      $region10: #{tpu_custom_call.1} parent=5 // pred_check_branch
        %271 = sbr.rel (%p268) target = $region12
      $region11: #{tpu_custom_call.1} parent=5 // pred_region
        %s272 = ssub.s32 %s17, 1
        // Predicated region
        $region13: #{tpu_custom_call.1} parent=11 // pred_check
          %p273 = pneg %p102
        $region14: #{tpu_custom_call.1} parent=11 // pred_check_branch
          %275 = sbr.rel (%p273) target = $region16
        $region15: #{tpu_custom_call.1} parent=11 // pred_region
          _
        $region16: #{tpu_custom_call.1} parent=11 // pred_fallthru
          _
      $region12: #{tpu_custom_call.1} parent=5 // pred_fallthru
        _
      %p276 = scmp.lt.s32.totalorder %s17, 4
      // Predicated region
      $region17: #{tpu_custom_call.1} parent=5 // pred_check
        %p277 = pneg %p276
      $region18: #{tpu_custom_call.1} parent=5 // pred_check_branch
        %279 = sbr.rel (%p277) target = $region20
      $region19: #{tpu_custom_call.1} parent=5 // pred_region
        // Predicated region
        $region21: #{tpu_custom_call.1} parent=19 // pred_check
          %p280 = pneg %p49
        $region22: #{tpu_custom_call.1} parent=19 // pred_check_branch
          %282 = sbr.rel (%p280) target = $region24
        $region23: #{tpu_custom_call.1} parent=19 // pred_region
          %p283 = scmp.lt.s32.totalorder %s24, 1
          %s284 = scalar_select %p283, %s24, 1
          %s285 = smul.addr %s284, 8
          %s286 = scalar_lea.vmem %s0, %s285
        $region24: #{tpu_custom_call.1} parent=19 // pred_fallthru
          _
        // Predicated region
        $region25: #{tpu_custom_call.1} parent=19 // pred_check
          %p287 = pneg %p75
        $region26: #{tpu_custom_call.1} parent=19 // pred_check_branch
          %289 = sbr.rel (%p287) target = $region28
        $region27: #{tpu_custom_call.1} parent=19 // pred_region
          %p290 = scmp.lt.s32.totalorder %s24, 1
          %s291 = scalar_select %p290, %s24, 1
          %s292 = scalar_lea.vmem %s1, %s291
        $region28: #{tpu_custom_call.1} parent=19 // pred_fallthru
          _
        // Predicated region
        $region29: #{tpu_custom_call.1} parent=19 // pred_check
          %p293 = pneg %p122
        $region30: #{tpu_custom_call.1} parent=19 // pred_check_branch
          %295 = sbr.rel (%p293) target = $region32
        $region31: #{tpu_custom_call.1} parent=19 // pred_region
          %p296 = scmp.lt.s32.totalorder %s25, 1
          %s297 = scalar_select %p296, %s25, 1
          %s298 = smul.addr %s297, 4
          %s299 = smul.addr %s298, 4
          %s300 = scalar_lea.vmem %s3, %s299
        $region32: #{tpu_custom_call.1} parent=19 // pred_fallthru
          _
        // Predicated region
        $region33: #{tpu_custom_call.1} parent=19 // pred_check
          %p301 = pneg %p148
        $region34: #{tpu_custom_call.1} parent=19 // pred_check_branch
          %303 = sbr.rel (%p301) target = $region36
        $region35: #{tpu_custom_call.1} parent=19 // pred_region
          %p304 = scmp.lt.s32.totalorder %s25, 1
          %s305 = scalar_select %p304, %s25, 1
          %s306 = smul.addr %s305, 4
          %s307 = smul.addr %s306, 4
          %s308 = scalar_lea.vmem %s4, %s307
        $region36: #{tpu_custom_call.1} parent=19 // pred_fallthru
          _
        // Predicated region
        $region37: #{tpu_custom_call.1} parent=19 // pred_check
          %p309 = pneg %p174
        $region38: #{tpu_custom_call.1} parent=19 // pred_check_branch
          %311 = sbr.rel (%p309) target = $region40
        $region39: #{tpu_custom_call.1} parent=19 // pred_region
          %p312 = scmp.lt.s32.totalorder %s25, 1
          %s313 = scalar_select %p312, %s25, 1
          %s314 = smul.addr %s313, 4
          %s315 = smul.addr %s314, 4
          %s316 = scalar_lea.vmem %s5, %s315
        $region40: #{tpu_custom_call.1} parent=19 // pred_fallthru
          _
        // Predicated region
        $region41: #{tpu_custom_call.1} parent=19 // pred_check
          %p317 = pneg %p200
        $region42: #{tpu_custom_call.1} parent=19 // pred_check_branch
          %319 = sbr.rel (%p317) target = $region44
        $region43: #{tpu_custom_call.1} parent=19 // pred_region
          %p320 = scmp.lt.s32.totalorder %s25, 1
          %s321 = scalar_select %p320, %s25, 1
          %s322 = smul.addr %s321, 16
          %s323 = smul.addr %s322, 4
          %s324 = scalar_lea.vmem %s6, %s323
        $region44: #{tpu_custom_call.1} parent=19 // pred_fallthru
          _
        // Predicated region
        $region45: #{tpu_custom_call.1} parent=19 // pred_check
          %p325 = pneg %p226
        $region46: #{tpu_custom_call.1} parent=19 // pred_check_branch
          %327 = sbr.rel (%p325) target = $region48
        $region47: #{tpu_custom_call.1} parent=19 // pred_region
          %p328 = scmp.lt.s32.totalorder %s25, 1
          %s329 = scalar_select %p328, %s25, 1
          %s330 = smul.addr %s329, 8
          %s331 = scalar_lea.vmem %s7, %s330
        $region48: #{tpu_custom_call.1} parent=19 // pred_fallthru
          _
      $region20: #{tpu_custom_call.1} parent=5 // pred_fallthru
        _
      %p332 = scmp.le.s32.totalorder 1, %s17
      %p333 = scmp.lt.s32.totalorder %s17, 5
      %p334 = pnand %p332, %p333
      %p335 = pneg %p334
      // Predicated region
      $region49: #{tpu_custom_call.1} parent=5 // pred_check
        _
      $region50: #{tpu_custom_call.1} parent=5 // pred_check_branch
        %337 = sbr.rel (%p334) target = $region52
      $region51: #{tpu_custom_call.1} parent=5 // pred_region
        %s338 = ssub.s32 %s17, 1
        %p339 = scmp.lt.s32.totalorder %s26, 1
        %s340 = scalar_select %p339, %s26, 1
        %s341 = smul.addr %s340, 8
        %s342 = scalar_lea.vmem %s0, %s341
        %p343 = pneg %p55
        %p344 = pneg %p52
        %p345 = scmp.lt.s32.totalorder %s26, 1
        %s346 = scalar_select %p345, %s26, 1
        %s347 = scalar_lea.vmem %s1, %s346
        %p348 = pneg %p81
        %p349 = pneg %p78
        %p350 = pneg %p102
        %p351 = pneg %p99
        %p352 = scmp.lt.s32.totalorder %s27, 1
        %s353 = scalar_select %p352, %s27, 1
        %s354 = smul.addr %s353, 4
        %s355 = smul.addr %s354, 4
        %s356 = scalar_lea.vmem %s3, %s355
        %p357 = pneg %p128
        %p358 = pneg %p125
        %p359 = scmp.lt.s32.totalorder %s27, 1
        %s360 = scalar_select %p359, %s27, 1
        %s361 = smul.addr %s360, 4
        %s362 = smul.addr %s361, 4
        %s363 = scalar_lea.vmem %s4, %s362
        %p364 = pneg %p154
        %p365 = pneg %p151
        %p366 = scmp.lt.s32.totalorder %s27, 1
        %s367 = scalar_select %p366, %s27, 1
        %s368 = smul.addr %s367, 4
        %s369 = smul.addr %s368, 4
        %s370 = scalar_lea.vmem %s5, %s369
        %p371 = pneg %p180
        %p372 = pneg %p177
        %p373 = scmp.lt.s32.totalorder %s27, 1
        %s374 = scalar_select %p373, %s27, 1
        %s375 = smul.addr %s374, 16
        %s376 = smul.addr %s375, 4
        %s377 = scalar_lea.vmem %s6, %s376
        %p378 = pneg %p206
        %p379 = pneg %p203
        %p380 = scmp.lt.s32.totalorder %s27, 1
        %s381 = scalar_select %p380, %s27, 1
        %s382 = smul.addr %s381, 8
        %s383 = scalar_lea.vmem %s7, %s382
        %p384 = pneg %p232
        %p385 = pneg %p229
        %p386 = pneg %p258
        %p387 = pneg %p255
        %s388 = sand.u32 %s245, 1
        %s389 = scalar_lea.sflag [#allocation4], %s388
        %s390 = sand.u32 %s245, 1
        %s391 = scalar_lea.vmem [#allocation3], %s390
        %p392 = scmp.lt.s32.totalorder %s26, 1
        %s393 = scalar_select %p392, %s26, 1
        %s394 = smul.addr %s393, 8
        %s395 = scalar_lea.vmem %s0, %s394
        %p396 = scmp.lt.s32.totalorder %s26, 1
        %s397 = scalar_select %p396, %s26, 1
        %s398 = scalar_lea.vmem %s1, %s397
        %p399 = scmp.lt.s32.totalorder %s27, 1
        %s400 = scalar_select %p399, %s27, 1
        %s401 = smul.addr %s400, 4
        %s402 = smul.addr %s401, 4
        %s403 = scalar_lea.vmem %s3, %s402
        %p404 = scmp.lt.s32.totalorder %s27, 1
        %s405 = scalar_select %p404, %s27, 1
        %s406 = smul.addr %s405, 4
        %s407 = smul.addr %s406, 4
        %s408 = scalar_lea.vmem %s4, %s407
        %p409 = scmp.lt.s32.totalorder %s27, 1
        %s410 = scalar_select %p409, %s27, 1
        %s411 = smul.addr %s410, 4
        %s412 = smul.addr %s411, 4
        %s413 = scalar_lea.vmem %s5, %s412
        %p414 = scmp.lt.s32.totalorder %s27, 1
        %s415 = scalar_select %p414, %s27, 1
        %s416 = smul.addr %s415, 16
        %s417 = smul.addr %s416, 4
        %s418 = scalar_lea.vmem %s6, %s417
        %p419 = scmp.lt.s32.totalorder %s27, 1
        %s420 = scalar_select %p419, %s27, 1
        %s421 = smul.addr %s420, 8
        %s422 = scalar_lea.vmem %s7, %s421
        %p424 = scmp.eq.s32.totalorder %s27, 0
        // Predicated region
        $region53: #{tpu_custom_call.1} parent=51 // pred_check
          %p425 = pneg %p424
        $region54: #{tpu_custom_call.1} parent=51 // pred_check_branch
          %427 = sbr.rel (%p425) target = $region56
        $region55: #{tpu_custom_call.1} parent=51 // pred_region
          %v428 = vld [vmem:[%s2] sm:$0x3]
          %v429 = vld [vmem:[%s395] sm:$0xff]
          %vm430 = vcmask 261120
          %v431 = vsel %vm430, %v429, 0.0
          %432 = vadd.xlane.f32.xlu0 %v431
          %v433 = vpop.xlane.xlu0 %432
          %v434 = vrcp.pop 32.0
          %v435 = vmul.f32 32.0, %v434
          %v436 = vsub.f32 1.0, %v435
          %v437 = vmul.f32 %v434, %v436
          %v438 = vadd.f32 %v434, %v437
          %vm439 = vweird.f32 %v434
          %v440 = vsel %vm439, %v434, %v438
          %v441 = vmul.f32 %v433, %v440
          %v442 = vsub.f32 %v429, %v441
          %v443 = vmul.f32 %v442, %v442
          %v444 = vsel %vm430, %v443, 0.0
          %445 = vadd.xlane.f32.xlu0 %v444
          %v446 = vpop.xlane.xlu0 %445
          %v447 = vmul.f32 %v446, %v440
          %v448 = vadd.f32 %v447, 1e-12
          %v449 = vrsqrt.pop %v448
          %v450 = vmul.f32 %v449, %v448
          %v451 = vmul.f32 %v450, %v449
          %v452 = vmul.f32 0.5, %v451
          %v453 = vsub.f32 1.5, %v452
          %v454 = vmul.f32 %v449, %v453
          %vm455 = vweird.f32 %v448
          %vm456 = vweird.f32 %v449
          %vm457 = vmor %vm455, %vm456
          %v458 = vsel %vm457, %v449, %v454
          %v459 = vmul.f32 %v442, %v458
          %v460 = vperm.slane %v428, 0
          %v461 = vmul.f32 %v459, %v460
          %v462 = vperm.slane %v428, 1
          %v463 = vadd.f32 %v461, %v462
          %464 = vst.msk [vmem:[#allocation2] sm:$0xff] %vm430, %v463
        $region56: #{tpu_custom_call.1} parent=51 // pred_fallthru
          _
        %v465 = vld [vmem:[%s403] sm:$0xf]
        %v466 = vld [vmem:[%s403 + $0x4] sm:$0xf]
        %v467 = vld [vmem:[%s403 + $0x8] sm:$0xf]
        %v468 = vld [vmem:[%s403 + $0xc] sm:$0xf]
        %v469 = vld [vmem:[%s408] sm:$0xf]
        %v470 = vld [vmem:[%s408 + $0x4] sm:$0xf]
        %v471 = vld [vmem:[%s408 + $0x8] sm:$0xf]
        %v472 = vld [vmem:[%s408 + $0xc] sm:$0xf]
        %v473 = vld [vmem:[%s413] sm:$0xf]
        %v474 = vld [vmem:[%s413 + $0x4] sm:$0xf]
        %v475 = vld [vmem:[%s413 + $0x8] sm:$0xf]
        %v476 = vld [vmem:[%s413 + $0xc] sm:$0xf]
        %v477 = vld [vmem:[%s418] sm:$0xf]
        %v478 = vld [vmem:[%s418 + $0x4] sm:$0xf]
        %v479 = vld [vmem:[%s418 + $0x8] sm:$0xf]
        %v480 = vld [vmem:[%s418 + $0xc] sm:$0xf]
        %v481 = vld [vmem:[%s418 + $0x10] sm:$0xf]
        %v482 = vld [vmem:[%s418 + $0x14] sm:$0xf]
        %v483 = vld [vmem:[%s418 + $0x18] sm:$0xf]
        %v484 = vld [vmem:[%s418 + $0x1c] sm:$0xf]
        %v485 = vld [vmem:[%s418 + $0x20] sm:$0xf]
        %v486 = vld [vmem:[%s418 + $0x24] sm:$0xf]
        %v487 = vld [vmem:[%s418 + $0x28] sm:$0xf]
        %v488 = vld [vmem:[%s418 + $0x2c] sm:$0xf]
        %v489 = vld [vmem:[%s418 + $0x30] sm:$0xf]
        %v490 = vld [vmem:[%s418 + $0x34] sm:$0xf]
        %v491 = vld [vmem:[%s418 + $0x38] sm:$0xf]
        %v492 = vld [vmem:[%s418 + $0x3c] sm:$0xf]
        %v493 = vld [vmem:[%s422] sm:$0xff]
        %v494 = vld [vmem:[#allocation2] sm:$0xff]
        %v495 = vld [vmem:[%s398] sm:$0x1]
        %v496 = vpack.c.bf16 %v494, %v494
        %v497 = vperm.slane %v493, 0
        %v502 = vunpack.c.l.b16 %v465
        %v503 = vunpack.c.l.b16 %v466
        %v504 = vunpack.c.l.b16 %v467
        %v505 = vunpack.c.l.b16 %v468
        %v506 = vpack.c.b16 %v503, %v502
        %v507 = vpack.c.b16 %v505, %v504
        %vm510 = vcmask 261120
        %v512 = vsel %vm510, %v496, 0
        %514 = vmatpush.bf16.msra.mxu0 0
        %515 = vmatpush.bf16.msra.mxu0 0
        %516 = vmatpush.bf16.msra.mxu0 0
        %517 = vmatpush.bf16.msra.mxu0 0
        %518 = vmatpush.bf16.msra.mxu0 0
        %519 = vmatpush.bf16.msra.mxu0 0
        %520 = vmatpush.bf16.msra.mxu0 %v507
        %521 = vmatpush.bf16.msra.mxu0 %v506
        %522 = vmatmul.bf16.gmra.mxu0 %v512
        %v523 = vpop.f32.mrf.mxu0
        %v524 = vadd.f32 %v497, %v523
        %v525 = vpop.f32.mrf.mxu0
        %526 = vdwg.mxu0
        %v527 = vpack.c.bf16 %v524, %v524
        %529 = vrot.lane.b32.xlu0 %v527, 120
        %v530 = vpop.permute.xlu0 %529
        %531 = vrot.lane.b32.xlu0 %v527, 112
        %v532 = vpop.permute.xlu0 %531
        %533 = vrot.lane.b32.xlu0 %v527, 104
        %v534 = vpop.permute.xlu0 %533
        %v536 = vperm.slane %v495, 0
        %v538 = vunpack.c.l.b16 %v527
        %v539 = vunpack.c.l.b16 %v530
        %v540 = vunpack.c.l.b16 %v532
        %v541 = vunpack.c.l.b16 %v534
        %v542 = vpack.c.b16 %v538, %v538
        %v543 = vpack.c.b16 %v539, %v539
        %v544 = vpack.c.b16 %v540, %v540
        %v545 = vpack.c.b16 %v541, %v541
        %546 = vrot.lane.b32.xlu0 %v542, 96
        %v547 = vpop.permute.xlu0 %546
        %548 = vrot.lane.b32.xlu0 %v543, 96
        %v549 = vpop.permute.xlu0 %548
        %550 = vrot.lane.b32.xlu0 %v544, 96
        %v551 = vpop.permute.xlu0 %550
        %552 = vrot.lane.b32.xlu0 %v545, 96
        %v553 = vpop.permute.xlu0 %552
        %558 = vxpose.xlu0.c.b16.start [1/8] %v547, 128
        %559 = vxpose.xlu0.c.b16.cont [2/8] 0, 128
        %560 = vxpose.xlu0.c.b16.cont [3/8] 0, 128
        %561 = vxpose.xlu0.c.b16.cont [4/8] 0, 128
        %562 = vxpose.xlu0.c.b16.cont [5/8] 0, 128
        %563 = vxpose.xlu0.c.b16.cont [6/8] 0, 128
        %564 = vxpose.xlu0.c.b16.cont [7/8] 0, 128
        %565 = vxpose.xlu0.c.b16.end [8/8] 0, 128
        %v566 = vpop.trf.xlu0
        %v567 = vpop.trf.xlu0
        %v568 = vpop.trf.xlu0
        %v569 = vpop.trf.xlu0
        %v570 = vpop.trf.xlu0
        %v571 = vpop.trf.xlu0
        %v572 = vpop.trf.xlu0
        %v573 = vpop.trf.xlu0
        %574 = vxpose.xlu0.c.b16.start [1/8] %v549, 128
        %575 = vxpose.xlu0.c.b16.cont [2/8] 0, 128
        %576 = vxpose.xlu0.c.b16.cont [3/8] 0, 128
        %577 = vxpose.xlu0.c.b16.cont [4/8] 0, 128
        %578 = vxpose.xlu0.c.b16.cont [5/8] 0, 128
        %579 = vxpose.xlu0.c.b16.cont [6/8] 0, 128
        %580 = vxpose.xlu0.c.b16.cont [7/8] 0, 128
        %581 = vxpose.xlu0.c.b16.end [8/8] 0, 128
        %v582 = vpop.trf.xlu0
        %v583 = vpop.trf.xlu0
        %v584 = vpop.trf.xlu0
        %v585 = vpop.trf.xlu0
        %v586 = vpop.trf.xlu0
        %v587 = vpop.trf.xlu0
        %v588 = vpop.trf.xlu0
        %v589 = vpop.trf.xlu0
        %590 = vxpose.xlu0.c.b16.start [1/8] %v551, 128
        %591 = vxpose.xlu0.c.b16.cont [2/8] 0, 128
        %592 = vxpose.xlu0.c.b16.cont [3/8] 0, 128
        %593 = vxpose.xlu0.c.b16.cont [4/8] 0, 128
        %594 = vxpose.xlu0.c.b16.cont [5/8] 0, 128
        %595 = vxpose.xlu0.c.b16.cont [6/8] 0, 128
        %596 = vxpose.xlu0.c.b16.cont [7/8] 0, 128
        %597 = vxpose.xlu0.c.b16.end [8/8] 0, 128
        %v598 = vpop.trf.xlu0
        %v599 = vpop.trf.xlu0
        %v600 = vpop.trf.xlu0
        %v601 = vpop.trf.xlu0
        %v602 = vpop.trf.xlu0
        %v603 = vpop.trf.xlu0
        %v604 = vpop.trf.xlu0
        %v605 = vpop.trf.xlu0
        %606 = vxpose.xlu0.c.b16.start [1/8] %v553, 128
        %607 = vxpose.xlu0.c.b16.cont [2/8] 0, 128
        %608 = vxpose.xlu0.c.b16.cont [3/8] 0, 128
        %609 = vxpose.xlu0.c.b16.cont [4/8] 0, 128
        %610 = vxpose.xlu0.c.b16.cont [5/8] 0, 128
        %611 = vxpose.xlu0.c.b16.cont [6/8] 0, 128
        %612 = vxpose.xlu0.c.b16.cont [7/8] 0, 128
        %613 = vxpose.xlu0.c.b16.end [8/8] 0, 128
        %v614 = vpop.trf.xlu0
        %v615 = vpop.trf.xlu0
        %v616 = vpop.trf.xlu0
        %v617 = vpop.trf.xlu0
        %v618 = vpop.trf.xlu0
        %v619 = vpop.trf.xlu0
        %v620 = vpop.trf.xlu0
        %v621 = vpop.trf.xlu0
        %vm622 = vcmask 64512
        %v624 = vsel %vm622, %v527, 0
        %vm626 = vcmask 1043456
        %v628 = vsel %vm626, %v566, 0
        %630 = vmatpush.bf16.msra.mxu0 0
        %631 = vmatpush.bf16.msra.mxu0 0
        %632 = vmatpush.bf16.msra.mxu0 0
        %633 = vmatpush.bf16.msra.mxu0 0
        %634 = vmatpush.bf16.msra.mxu0 0
        %635 = vmatpush.bf16.msra.mxu0 0
        %636 = vmatpush.bf16.msra.mxu0 0
        %637 = vmatpush.bf16.msra.mxu0 %v628
        %638 = vmatmul.bf16.gmra.mxu0 %v624
        %v639 = vpop.f32.mrf.mxu0
        %v640 = vadd.f32 %v536, %v639
        %v641 = vpop.f32.mrf.mxu0
        %642 = vdwg.mxu0
        %v644 = vsel %vm622, %v530, 0
        %v647 = vsel %vm626, %v582, 0
        %649 = vmatpush.bf16.msra.mxu0 0
        %650 = vmatpush.bf16.msra.mxu0 0
        %651 = vmatpush.bf16.msra.mxu0 0
        %652 = vmatpush.bf16.msra.mxu0 0
        %653 = vmatpush.bf16.msra.mxu0 0
        %654 = vmatpush.bf16.msra.mxu0 0
        %655 = vmatpush.bf16.msra.mxu0 0
        %656 = vmatpush.bf16.msra.mxu0 %v647
        %657 = vmatmul.bf16.gmra.mxu0 %v644
        %v658 = vpop.f32.mrf.mxu0
        %v659 = vadd.f32 %v536, %v658
        %v660 = vpop.f32.mrf.mxu0
        %661 = vdwg.mxu0
        %v663 = vsel %vm622, %v532, 0
        %v666 = vsel %vm626, %v598, 0
        %668 = vmatpush.bf16.msra.mxu0 0
        %669 = vmatpush.bf16.msra.mxu0 0
        %670 = vmatpush.bf16.msra.mxu0 0
        %671 = vmatpush.bf16.msra.mxu0 0
        %672 = vmatpush.bf16.msra.mxu0 0
        %673 = vmatpush.bf16.msra.mxu0 0
        %674 = vmatpush.bf16.msra.mxu0 0
        %675 = vmatpush.bf16.msra.mxu0 %v666
        %676 = vmatmul.bf16.gmra.mxu0 %v663
        %v677 = vpop.f32.mrf.mxu0
        %v678 = vadd.f32 %v536, %v677
        %v679 = vpop.f32.mrf.mxu0
        %680 = vdwg.mxu0
        %v682 = vsel %vm622, %v534, 0
        %v685 = vsel %vm626, %v614, 0
        %687 = vmatpush.bf16.msra.mxu0 0
        %688 = vmatpush.bf16.msra.mxu0 0
        %689 = vmatpush.bf16.msra.mxu0 0
        %690 = vmatpush.bf16.msra.mxu0 0
        %691 = vmatpush.bf16.msra.mxu0 0
        %692 = vmatpush.bf16.msra.mxu0 0
        %693 = vmatpush.bf16.msra.mxu0 0
        %694 = vmatpush.bf16.msra.mxu0 %v685
        %695 = vmatmul.bf16.gmra.mxu0 %v682
        %v696 = vpop.f32.mrf.mxu0
        %v697 = vadd.f32 %v536, %v696
        %v698 = vpop.f32.mrf.mxu0
        %699 = vdwg.mxu0
        %v700 = vsel %vm622, %v640, -inf
        %701 = vmax.xlane.f32.xlu0 %v700
        %v702 = vpop.xlane.xlu0 %701
        %v703 = vsel %vm622, %v659, -inf
        %704 = vmax.xlane.f32.xlu0 %v703
        %v705 = vpop.xlane.xlu0 %704
        %v706 = vsel %vm622, %v678, -inf
        %707 = vmax.xlane.f32.xlu0 %v706
        %v708 = vpop.xlane.xlu0 %707
        %v709 = vsel %vm622, %v697, -inf
        %710 = vmax.xlane.f32.xlu0 %v709
        %v711 = vpop.xlane.xlu0 %710
        %v712 = vsub.f32 %v640, %v702
        %v713 = vsub.f32 %v659, %v705
        %v714 = vsub.f32 %v678, %v708
        %v715 = vsub.f32 %v697, %v711
        %v716 = vmul.f32 %v712, 1.442695
        %v717 = vpow.pop %v716
        %v718 = vmul.f32 %v713, 1.442695
        %v719 = vpow.pop %v718
        %v720 = vmul.f32 %v714, 1.442695
        %v721 = vpow.pop %v720
        %v722 = vmul.f32 %v715, 1.442695
        %v723 = vpow.pop %v722
        %v724 = vsel %vm622, %v717, 0.0
        %725 = vadd.xlane.f32.xlu0 %v724
        %v726 = vpop.xlane.xlu0 %725
        %v727 = vsel %vm622, %v719, 0.0
        %728 = vadd.xlane.f32.xlu0 %v727
        %v729 = vpop.xlane.xlu0 %728
        %v730 = vsel %vm622, %v721, 0.0
        %731 = vadd.xlane.f32.xlu0 %v730
        %v732 = vpop.xlane.xlu0 %731
        %v733 = vsel %vm622, %v723, 0.0
        %734 = vadd.xlane.f32.xlu0 %v733
        %v735 = vpop.xlane.xlu0 %734
        %v736 = vrcp.pop %v726
        %v737 = vrcp.pop %v729
        %v738 = vrcp.pop %v732
        %v739 = vrcp.pop %v735
        %v740 = vmul.f32 %v717, %v736
        %v741 = vmul.f32 %v719, %v737
        %v742 = vmul.f32 %v721, %v738
        %v743 = vmul.f32 %v723, %v739
        %v744 = vpack.c.bf16 %v740, %v740
        %v745 = vpack.c.bf16 %v741, %v741
        %v746 = vpack.c.bf16 %v742, %v742
        %v747 = vpack.c.bf16 %v743, %v743
        %748 = vrot.lane.b32.xlu0 %v542, 64
        %v749 = vpop.permute.xlu0 %748
        %750 = vrot.lane.b32.xlu0 %v543, 64
        %v751 = vpop.permute.xlu0 %750
        %752 = vrot.lane.b32.xlu0 %v544, 64
        %v753 = vpop.permute.xlu0 %752
        %754 = vrot.lane.b32.xlu0 %v545, 64
        %v755 = vpop.permute.xlu0 %754
        %760 = vxpose.xlu0.c.b16.start [1/8] %v749, 128
        %761 = vxpose.xlu0.c.b16.cont [2/8] 0, 128
        %762 = vxpose.xlu0.c.b16.cont [3/8] 0, 128
        %763 = vxpose.xlu0.c.b16.cont [4/8] 0, 128
        %764 = vxpose.xlu0.c.b16.cont [5/8] 0, 128
        %765 = vxpose.xlu0.c.b16.cont [6/8] 0, 128
        %766 = vxpose.xlu0.c.b16.cont [7/8] 0, 128
        %767 = vxpose.xlu0.c.b16.end [8/8] 0, 128
        %v768 = vpop.trf.xlu0
        %v769 = vpop.trf.xlu0
        %v770 = vpop.trf.xlu0
        %v771 = vpop.trf.xlu0
        %v772 = vpop.trf.xlu0
        %v773 = vpop.trf.xlu0
        %v774 = vpop.trf.xlu0
        %v775 = vpop.trf.xlu0
        %776 = vxpose.xlu0.c.b16.start [1/8] %v751, 128
        %777 = vxpose.xlu0.c.b16.cont [2/8] 0, 128
        %778 = vxpose.xlu0.c.b16.cont [3/8] 0, 128
        %779 = vxpose.xlu0.c.b16.cont [4/8] 0, 128
        %780 = vxpose.xlu0.c.b16.cont [5/8] 0, 128
        %781 = vxpose.xlu0.c.b16.cont [6/8] 0, 128
        %782 = vxpose.xlu0.c.b16.cont [7/8] 0, 128
        %783 = vxpose.xlu0.c.b16.end [8/8] 0, 128
        %v784 = vpop.trf.xlu0
        %v785 = vpop.trf.xlu0
        %v786 = vpop.trf.xlu0
        %v787 = vpop.trf.xlu0
        %v788 = vpop.trf.xlu0
        %v789 = vpop.trf.xlu0
        %v790 = vpop.trf.xlu0
        %v791 = vpop.trf.xlu0
        %792 = vxpose.xlu0.c.b16.start [1/8] %v753, 128
        %793 = vxpose.xlu0.c.b16.cont [2/8] 0, 128
        %794 = vxpose.xlu0.c.b16.cont [3/8] 0, 128
        %795 = vxpose.xlu0.c.b16.cont [4/8] 0, 128
        %796 = vxpose.xlu0.c.b16.cont [5/8] 0, 128
        %797 = vxpose.xlu0.c.b16.cont [6/8] 0, 128
        %798 = vxpose.xlu0.c.b16.cont [7/8] 0, 128
        %799 = vxpose.xlu0.c.b16.end [8/8] 0, 128
        %v800 = vpop.trf.xlu0
        %v801 = vpop.trf.xlu0
        %v802 = vpop.trf.xlu0
        %v803 = vpop.trf.xlu0
        %v804 = vpop.trf.xlu0
        %v805 = vpop.trf.xlu0
        %v806 = vpop.trf.xlu0
        %v807 = vpop.trf.xlu0
        %808 = vxpose.xlu0.c.b16.start [1/8] %v755, 128
        %809 = vxpose.xlu0.c.b16.cont [2/8] 0, 128
        %810 = vxpose.xlu0.c.b16.cont [3/8] 0, 128
        %811 = vxpose.xlu0.c.b16.cont [4/8] 0, 128
        %812 = vxpose.xlu0.c.b16.cont [5/8] 0, 128
        %813 = vxpose.xlu0.c.b16.cont [6/8] 0, 128
        %814 = vxpose.xlu0.c.b16.cont [7/8] 0, 128
        %815 = vxpose.xlu0.c.b16.end [8/8] 0, 128
        %v816 = vpop.trf.xlu0
        %v817 = vpop.trf.xlu0
        %v818 = vpop.trf.xlu0
        %v819 = vpop.trf.xlu0
        %v820 = vpop.trf.xlu0
        %v821 = vpop.trf.xlu0
        %v822 = vpop.trf.xlu0
        %v823 = vpop.trf.xlu0
        %v825 = vsel %vm622, %v768, 0
        %v828 = vsel %vm622, %v744, 0
        %830 = vmatpush.bf16.xpose.msra.mxu0 0
        %831 = vmatpush.bf16.xpose.msra.mxu0 0
        %832 = vmatpush.bf16.xpose.msra.mxu0 0
        %833 = vmatpush.bf16.xpose.msra.mxu0 0
        %834 = vmatpush.bf16.xpose.msra.mxu0 0
        %835 = vmatpush.bf16.xpose.msra.mxu0 0
        %836 = vmatpush.bf16.xpose.msra.mxu0 0
        %837 = vmatpush.bf16.xpose.msra.mxu0 %v828
        %838 = vmatmul.bf16.gmra.mxu0 %v825
        %v839 = vpop.f32.mrf.mxu0
        %v840 = vadd.f32 0.0, %v839
        %v841 = vpop.f32.mrf.mxu0
        %842 = vdwg.mxu0
        %v844 = vsel %vm622, %v784, 0
        %v847 = vsel %vm622, %v745, 0
        %849 = vmatpush.bf16.xpose.msra.mxu0 0
        %850 = vmatpush.bf16.xpose.msra.mxu0 0
        %851 = vmatpush.bf16.xpose.msra.mxu0 0
        %852 = vmatpush.bf16.xpose.msra.mxu0 0
        %853 = vmatpush.bf16.xpose.msra.mxu0 0
        %854 = vmatpush.bf16.xpose.msra.mxu0 0
        %855 = vmatpush.bf16.xpose.msra.mxu0 0
        %856 = vmatpush.bf16.xpose.msra.mxu0 %v847
        %857 = vmatmul.bf16.gmra.mxu0 %v844
        %v858 = vpop.f32.mrf.mxu0
        %v859 = vadd.f32 0.0, %v858
        %v860 = vpop.f32.mrf.mxu0
        %861 = vdwg.mxu0
        %v863 = vsel %vm622, %v800, 0
        %v866 = vsel %vm622, %v746, 0
        %868 = vmatpush.bf16.xpose.msra.mxu0 0
        %869 = vmatpush.bf16.xpose.msra.mxu0 0
        %870 = vmatpush.bf16.xpose.msra.mxu0 0
        %871 = vmatpush.bf16.xpose.msra.mxu0 0
        %872 = vmatpush.bf16.xpose.msra.mxu0 0
        %873 = vmatpush.bf16.xpose.msra.mxu0 0
        %874 = vmatpush.bf16.xpose.msra.mxu0 0
        %875 = vmatpush.bf16.xpose.msra.mxu0 %v866
        %876 = vmatmul.bf16.gmra.mxu0 %v863
        %v877 = vpop.f32.mrf.mxu0
        %v878 = vadd.f32 0.0, %v877
        %v879 = vpop.f32.mrf.mxu0
        %880 = vdwg.mxu0
        %v882 = vsel %vm622, %v816, 0
        %v885 = vsel %vm622, %v747, 0
        %887 = vmatpush.bf16.xpose.msra.mxu0 0
        %888 = vmatpush.bf16.xpose.msra.mxu0 0
        %889 = vmatpush.bf16.xpose.msra.mxu0 0
        %890 = vmatpush.bf16.xpose.msra.mxu0 0
        %891 = vmatpush.bf16.xpose.msra.mxu0 0
        %892 = vmatpush.bf16.xpose.msra.mxu0 0
        %893 = vmatpush.bf16.xpose.msra.mxu0 0
        %894 = vmatpush.bf16.xpose.msra.mxu0 %v885
        %895 = vmatmul.bf16.gmra.mxu0 %v882
        %v896 = vpop.f32.mrf.mxu0
        %v897 = vadd.f32 0.0, %v896
        %v898 = vpop.f32.mrf.mxu0
        %899 = vdwg.mxu0
        %900 = vxpose.xlu0.b32.start [1/16] %v840, 128
        %901 = vxpose.xlu0.b32.cont [2/16] 0.0, 128
        %902 = vxpose.xlu0.b32.cont [3/16] 0.0, 128
        %903 = vxpose.xlu0.b32.cont [4/16] 0.0, 128
        %904 = vxpose.xlu0.b32.cont [5/16] 0.0, 128
        %905 = vxpose.xlu0.b32.cont [6/16] 0.0, 128
        %906 = vxpose.xlu0.b32.cont [7/16] 0.0, 128
        %907 = vxpose.xlu0.b32.cont [8/16] 0.0, 128
        %908 = vxpose.xlu0.b32.cont [9/16] 0.0, 128
        %909 = vxpose.xlu0.b32.cont [10/16] 0.0, 128
        %910 = vxpose.xlu0.b32.cont [11/16] 0.0, 128
        %911 = vxpose.xlu0.b32.cont [12/16] 0.0, 128
        %912 = vxpose.xlu0.b32.cont [13/16] 0.0, 128
        %913 = vxpose.xlu0.b32.cont [14/16] 0.0, 128
        %914 = vxpose.xlu0.b32.cont [15/16] 0.0, 128
        %915 = vxpose.xlu0.b32.end [16/16] 0.0, 128
        %v916 = vpop.trf.xlu0
        %v917 = vpop.trf.xlu0
        %v918 = vpop.trf.xlu0
        %v919 = vpop.trf.xlu0
        %v920 = vpop.trf.xlu0
        %v921 = vpop.trf.xlu0
        %v922 = vpop.trf.xlu0
        %v923 = vpop.trf.xlu0
        %v924 = vpop.trf.xlu0
        %v925 = vpop.trf.xlu0
        %v926 = vpop.trf.xlu0
        %v927 = vpop.trf.xlu0
        %v928 = vpop.trf.xlu0
        %v929 = vpop.trf.xlu0
        %v930 = vpop.trf.xlu0
        %v931 = vpop.trf.xlu0
        %932 = vxpose.xlu0.b32.start [1/16] %v859, 128
        %933 = vxpose.xlu0.b32.cont [2/16] 0.0, 128
        %934 = vxpose.xlu0.b32.cont [3/16] 0.0, 128
        %935 = vxpose.xlu0.b32.cont [4/16] 0.0, 128
        %936 = vxpose.xlu0.b32.cont [5/16] 0.0, 128
        %937 = vxpose.xlu0.b32.cont [6/16] 0.0, 128
        %938 = vxpose.xlu0.b32.cont [7/16] 0.0, 128
        %939 = vxpose.xlu0.b32.cont [8/16] 0.0, 128
        %940 = vxpose.xlu0.b32.cont [9/16] 0.0, 128
        %941 = vxpose.xlu0.b32.cont [10/16] 0.0, 128
        %942 = vxpose.xlu0.b32.cont [11/16] 0.0, 128
        %943 = vxpose.xlu0.b32.cont [12/16] 0.0, 128
        %944 = vxpose.xlu0.b32.cont [13/16] 0.0, 128
        %945 = vxpose.xlu0.b32.cont [14/16] 0.0, 128
        %946 = vxpose.xlu0.b32.cont [15/16] 0.0, 128
        %947 = vxpose.xlu0.b32.end [16/16] 0.0, 128
        %v948 = vpop.trf.xlu0
        %v949 = vpop.trf.xlu0
        %v950 = vpop.trf.xlu0
        %v951 = vpop.trf.xlu0
        %v952 = vpop.trf.xlu0
        %v953 = vpop.trf.xlu0
        %v954 = vpop.trf.xlu0
        %v955 = vpop.trf.xlu0
        %v956 = vpop.trf.xlu0
        %v957 = vpop.trf.xlu0
        %v958 = vpop.trf.xlu0
        %v959 = vpop.trf.xlu0
        %v960 = vpop.trf.xlu0
        %v961 = vpop.trf.xlu0
        %v962 = vpop.trf.xlu0
        %v963 = vpop.trf.xlu0
        %964 = vxpose.xlu0.b32.start [1/16] %v878, 128
        %965 = vxpose.xlu0.b32.cont [2/16] 0.0, 128
        %966 = vxpose.xlu0.b32.cont [3/16] 0.0, 128
        %967 = vxpose.xlu0.b32.cont [4/16] 0.0, 128
        %968 = vxpose.xlu0.b32.cont [5/16] 0.0, 128
        %969 = vxpose.xlu0.b32.cont [6/16] 0.0, 128
        %970 = vxpose.xlu0.b32.cont [7/16] 0.0, 128
        %971 = vxpose.xlu0.b32.cont [8/16] 0.0, 128
        %972 = vxpose.xlu0.b32.cont [9/16] 0.0, 128
        %973 = vxpose.xlu0.b32.cont [10/16] 0.0, 128
        %974 = vxpose.xlu0.b32.cont [11/16] 0.0, 128
        %975 = vxpose.xlu0.b32.cont [12/16] 0.0, 128
        %976 = vxpose.xlu0.b32.cont [13/16] 0.0, 128
        %977 = vxpose.xlu0.b32.cont [14/16] 0.0, 128
        %978 = vxpose.xlu0.b32.cont [15/16] 0.0, 128
        %979 = vxpose.xlu0.b32.end [16/16] 0.0, 128
        %v980 = vpop.trf.xlu0
        %v981 = vpop.trf.xlu0
        %v982 = vpop.trf.xlu0
        %v983 = vpop.trf.xlu0
        %v984 = vpop.trf.xlu0
        %v985 = vpop.trf.xlu0
        %v986 = vpop.trf.xlu0
        %v987 = vpop.trf.xlu0
        %v988 = vpop.trf.xlu0
        %v989 = vpop.trf.xlu0
        %v990 = vpop.trf.xlu0
        %v991 = vpop.trf.xlu0
        %v992 = vpop.trf.xlu0
        %v993 = vpop.trf.xlu0
        %v994 = vpop.trf.xlu0
        %v995 = vpop.trf.xlu0
        %996 = vxpose.xlu0.b32.start [1/16] %v897, 128
        %997 = vxpose.xlu0.b32.cont [2/16] 0.0, 128
        %998 = vxpose.xlu0.b32.cont [3/16] 0.0, 128
        %999 = vxpose.xlu0.b32.cont [4/16] 0.0, 128
        %1000 = vxpose.xlu0.b32.cont [5/16] 0.0, 128
        %1001 = vxpose.xlu0.b32.cont [6/16] 0.0, 128
        %1002 = vxpose.xlu0.b32.cont [7/16] 0.0, 128
        %1003 = vxpose.xlu0.b32.cont [8/16] 0.0, 128
        %1004 = vxpose.xlu0.b32.cont [9/16] 0.0, 128
        %1005 = vxpose.xlu0.b32.cont [10/16] 0.0, 128
        %1006 = vxpose.xlu0.b32.cont [11/16] 0.0, 128
        %1007 = vxpose.xlu0.b32.cont [12/16] 0.0, 128
        %1008 = vxpose.xlu0.b32.cont [13/16] 0.0, 128
        %1009 = vxpose.xlu0.b32.cont [14/16] 0.0, 128
        %1010 = vxpose.xlu0.b32.cont [15/16] 0.0, 128
        %1011 = vxpose.xlu0.b32.end [16/16] 0.0, 128
        %v1012 = vpop.trf.xlu0
        %v1013 = vpop.trf.xlu0
        %v1014 = vpop.trf.xlu0
        %v1015 = vpop.trf.xlu0
        %v1016 = vpop.trf.xlu0
        %v1017 = vpop.trf.xlu0
        %v1018 = vpop.trf.xlu0
        %v1019 = vpop.trf.xlu0
        %v1020 = vpop.trf.xlu0
        %v1021 = vpop.trf.xlu0
        %v1022 = vpop.trf.xlu0
        %v1023 = vpop.trf.xlu0
        %v1024 = vpop.trf.xlu0
        %v1025 = vpop.trf.xlu0
        %v1026 = vpop.trf.xlu0
        %v1027 = vpop.trf.xlu0
        %v1028 = vrot.slane %v980, 4
        %vm1029 = vcmask 1047556
        %v1030 = vsel %vm1029, %v1028, %v916
        %v1031 = vrot.slane %v916, 4
        %v1032 = vsel %vm1029, %v980, %v1031
        %v1034 = vunpack.c.l.s4 1983009808
        %v1035 = vunpack.c.0.s8 %v1034
        %v1036 = vperm.slane %v1030, %v1035
        %v1038 = vunpack.c.l.s4 1983009808
        %v1039 = vunpack.c.0.s8 %v1038
        %v1040 = vperm.slane %v1032, %v1039
        %v1041 = vrot.slane %v1012, 4
        %v1042 = vsel %vm1029, %v1041, %v948
        %v1043 = vrot.slane %v948, 4
        %v1044 = vsel %vm1029, %v1012, %v1043
        %v1046 = vunpack.c.l.s4 1983009808
        %v1047 = vunpack.c.0.s8 %v1046
        %v1048 = vperm.slane %v1042, %v1047
        %v1050 = vunpack.c.l.s4 1983009808
        %v1051 = vunpack.c.0.s8 %v1050
        %v1052 = vperm.slane %v1044, %v1051
        %v1053 = vrot.slane %v1048, 4
        %v1054 = vsel %vm1029, %v1053, %v1036
        %v1055 = vrot.slane %v1036, 4
        %v1056 = vsel %vm1029, %v1048, %v1055
        %v1058 = vunpack.c.l.s4 1934713408
        %v1059 = vunpack.c.0.s8 %v1058
        %v1060 = vperm.slane %v1054, %v1059
        %v1062 = vunpack.c.l.s4 1934713408
        %v1063 = vunpack.c.0.s8 %v1062
        %v1064 = vperm.slane %v1056, %v1063
        %v1065 = vrot.slane %v1052, 4
        %v1066 = vsel %vm1029, %v1065, %v1040
        %v1067 = vrot.slane %v1040, 4
        %v1068 = vsel %vm1029, %v1052, %v1067
        %v1070 = vunpack.c.l.s4 1934713408
        %v1071 = vunpack.c.0.s8 %v1070
        %v1072 = vperm.slane %v1066, %v1071
        %v1074 = vunpack.c.l.s4 1934713408
        %v1075 = vunpack.c.0.s8 %v1074
        %v1076 = vperm.slane %v1068, %v1075
        %v1077 = vrot.slane %v1060, 4
        %v1078 = vsel %vm1029, 0.0, %v1077
        %v1079 = vrot.slane %v1064, 4
        %v1080 = vsel %vm1029, 0.0, %v1079
        %v1081 = vrot.slane %v1072, 4
        %v1082 = vsel %vm1029, 0.0, %v1081
        %v1083 = vrot.slane %v1076, 4
        %v1084 = vsel %vm1029, 0.0, %v1083
        %v1085 = vsel %vm1029, %v1079, %v1060
        %v1087 = vunpack.c.l.s4 1983009808
        %v1088 = vunpack.c.0.s8 %v1087
        %v1089 = vperm.slane %v1085, %v1088
        %v1090 = vrot.slane %v1080, 4
        %v1091 = vsel %vm1029, %v1090, %v1078
        %v1093 = vunpack.c.l.s4 1983009808
        %v1094 = vunpack.c.0.s8 %v1093
        %v1095 = vperm.slane %v1091, %v1094
        %v1096 = vsel %vm1029, %v1083, %v1072
        %v1098 = vunpack.c.l.s4 1983009808
        %v1099 = vunpack.c.0.s8 %v1098
        %v1100 = vperm.slane %v1096, %v1099
        %v1101 = vrot.slane %v1084, 4
        %v1102 = vsel %vm1029, %v1101, %v1082
        %v1104 = vunpack.c.l.s4 1983009808
        %v1105 = vunpack.c.0.s8 %v1104
        %v1106 = vperm.slane %v1102, %v1105
        %v1107 = vrot.slane %v1095, 4
        %v1108 = vsel %vm1029, %v1107, %v1089
        %v1109 = vrot.slane %v1089, 4
        %v1110 = vsel %vm1029, %v1095, %v1109
        %v1112 = vunpack.c.l.s4 1934713408
        %v1113 = vunpack.c.0.s8 %v1112
        %v1114 = vperm.slane %v1108, %v1113
        %v1116 = vunpack.c.l.s4 1934713408
        %v1117 = vunpack.c.0.s8 %v1116
        %v1118 = vperm.slane %v1110, %v1117
        %v1119 = vrot.slane %v1106, 4
        %v1120 = vsel %vm1029, %v1119, %v1100
        %v1121 = vrot.slane %v1100, 4
        %v1122 = vsel %vm1029, %v1106, %v1121
        %v1124 = vunpack.c.l.s4 1934713408
        %v1125 = vunpack.c.0.s8 %v1124
        %v1126 = vperm.slane %v1120, %v1125
        %v1128 = vunpack.c.l.s4 1934713408
        %v1129 = vunpack.c.0.s8 %v1128
        %v1130 = vperm.slane %v1122, %v1129
        %v1131 = vrot.slane %v1126, 4
        %v1132 = vsel %vm1029, %v1131, %v1114
        %v1133 = vrot.slane %v1114, 4
        %v1134 = vsel %vm1029, %v1126, %v1133
        %v1135 = vrot.slane %v1130, 4
        %v1136 = vsel %vm1029, %v1135, %v1118
        %v1137 = vrot.slane %v1118, 4
        %v1138 = vsel %vm1029, %v1130, %v1137
        %1140 = vrot.lane.b32.xlu0 %v1134, 8
        %v1141 = vpop.permute.xlu0 %1140
        %1144 = vrot.lane.b32.xlu0 %v1136, 16
        %v1145 = vpop.permute.xlu0 %1144
        %1148 = vrot.lane.b32.xlu0 %v1138, 24
        %v1149 = vpop.permute.xlu0 %1148
        %v1151 = vsel %vm622, %v1132, %v1141
        %vm1152 = vcmask 130048
        %v1153 = vsel %vm1152, %v1151, %v1145
        %vm1154 = vcmask 195584
        %v1155 = vsel %vm1154, %v1153, %v1149
        %v1156 = vpack.c.bf16 %v1155, %v1155
        %v1157 = vperm.slane %v493, 1
        %v1162 = vunpack.c.l.b16 %v469
        %v1163 = vunpack.c.l.b16 %v470
        %v1164 = vunpack.c.l.b16 %v471
        %v1165 = vunpack.c.l.b16 %v472
        %v1166 = vpack.c.b16 %v1163, %v1162
        %v1167 = vpack.c.b16 %v1165, %v1164
        %v1171 = vsel %vm510, %v1156, 0
        %1173 = vmatpush.bf16.msra.mxu0 0
        %1174 = vmatpush.bf16.msra.mxu0 0
        %1175 = vmatpush.bf16.msra.mxu0 0
        %1176 = vmatpush.bf16.msra.mxu0 0
        %1177 = vmatpush.bf16.msra.mxu0 0
        %1178 = vmatpush.bf16.msra.mxu0 0
        %1179 = vmatpush.bf16.msra.mxu0 %v1167
        %1180 = vmatpush.bf16.msra.mxu0 %v1166
        %1181 = vmatmul.bf16.gmra.mxu0 %v1171
        %v1182 = vpop.f32.mrf.mxu0
        %v1183 = vadd.f32 %v1157, %v1182
        %v1184 = vpop.f32.mrf.mxu0
        %1185 = vdwg.mxu0
        %v1186 = vadd.f32 %v494, %v1183
        %v1187 = vsel %vm510, %v1186, 0.0
        %1188 = vadd.xlane.f32.xlu0 %v1187
        %v1189 = vpop.xlane.xlu0 %1188
        %v1190 = vrcp.pop 32.0
        %v1191 = vmul.f32 32.0, %v1190
        %v1192 = vsub.f32 1.0, %v1191
        %v1193 = vmul.f32 %v1190, %v1192
        %v1194 = vadd.f32 %v1190, %v1193
        %vm1195 = vweird.f32 %v1190
        %v1196 = vsel %vm1195, %v1190, %v1194
        %v1197 = vmul.f32 %v1189, %v1196
        %v1198 = vsub.f32 %v1186, %v1197
        %v1199 = vmul.f32 %v1198, %v1198
        %v1200 = vsel %vm510, %v1199, 0.0
        %1201 = vadd.xlane.f32.xlu0 %v1200
        %v1202 = vpop.xlane.xlu0 %1201
        %v1203 = vmul.f32 %v1202, %v1196
        %v1204 = vadd.f32 %v1203, 1e-12
        %v1205 = vrsqrt.pop %v1204
        %v1206 = vmul.f32 %v1205, %v1204
        %v1207 = vmul.f32 %v1206, %v1205
        %v1208 = vmul.f32 0.5, %v1207
        %v1209 = vsub.f32 1.5, %v1208
        %v1210 = vmul.f32 %v1205, %v1209
        %vm1211 = vweird.f32 %v1204
        %vm1212 = vweird.f32 %v1205
        %vm1213 = vmor %vm1211, %vm1212
        %v1214 = vsel %vm1213, %v1205, %v1210
        %v1215 = vmul.f32 %v1198, %v1214
        %v1216 = vperm.slane %v493, 2
        %v1217 = vmul.f32 %v1215, %v1216
        %v1218 = vperm.slane %v493, 3
        %v1219 = vadd.f32 %v1217, %v1218
        %v1220 = vpack.c.bf16 %v1219, %v1219
        %v1221 = vperm.slane %v493, 4
        %v1226 = vunpack.c.l.b16 %v473
        %v1227 = vunpack.c.l.b16 %v474
        %v1228 = vunpack.c.l.b16 %v475
        %v1229 = vunpack.c.l.b16 %v476
        %v1230 = vpack.c.b16 %v1227, %v1226
        %v1231 = vpack.c.b16 %v1229, %v1228
        %v1235 = vsel %vm510, %v1220, 0
        %1237 = vmatpush.bf16.msra.mxu0 0
        %1238 = vmatpush.bf16.msra.mxu0 0
        %1239 = vmatpush.bf16.msra.mxu0 0
        %1240 = vmatpush.bf16.msra.mxu0 0
        %1241 = vmatpush.bf16.msra.mxu0 0
        %1242 = vmatpush.bf16.msra.mxu0 0
        %1243 = vmatpush.bf16.msra.mxu0 %v1231
        %1244 = vmatpush.bf16.msra.mxu0 %v1230
        %1245 = vmatmul.bf16.gmra.mxu0 %v1235
        %v1246 = vpop.f32.mrf.mxu0
        %v1247 = vadd.f32 %v1221, %v1246
        %v1248 = vpop.f32.mrf.mxu0
        %1249 = vdwg.mxu0
        %v1250 = vmul.f32 %v1247, 0.5
        %v1251 = vmul.f32 %v1247, 0.044715
        %v1252 = vmul.f32 %v1251, %v1247
        %v1253 = vmul.f32 %v1252, %v1247
        %v1254 = vadd.f32 %v1247, %v1253
        %v1255 = vmul.f32 %v1254, 0.7978846
        %v1256 = vtanh.pop %v1255
        %v1257 = vadd.f32 %v1256, 1.0
        %v1258 = vmul.f32 %v1250, %v1257
        %v1259 = vpack.c.bf16 %v1258, %v1258
        %v1260 = vperm.slane %v493, 5
        %v1277 = vunpack.c.l.b16 %v477
        %v1278 = vunpack.c.l.b16 %v478
        %v1279 = vunpack.c.l.b16 %v479
        %v1280 = vunpack.c.l.b16 %v480
        %v1281 = vunpack.c.l.b16 %v481
        %v1282 = vunpack.c.l.b16 %v482
        %v1283 = vunpack.c.l.b16 %v483
        %v1284 = vunpack.c.l.b16 %v484
        %v1285 = vunpack.c.l.b16 %v485
        %v1286 = vunpack.c.l.b16 %v486
        %v1287 = vunpack.c.l.b16 %v487
        %v1288 = vunpack.c.l.b16 %v488
        %v1289 = vunpack.c.l.b16 %v489
        %v1290 = vunpack.c.l.b16 %v490
        %v1291 = vunpack.c.l.b16 %v491
        %v1292 = vunpack.c.l.b16 %v492
        %v1293 = vpack.c.b16 %v1278, %v1277
        %v1294 = vpack.c.b16 %v1280, %v1279
        %v1295 = vpack.c.b16 %v1282, %v1281
        %v1296 = vpack.c.b16 %v1284, %v1283
        %v1297 = vpack.c.b16 %v1286, %v1285
        %v1298 = vpack.c.b16 %v1288, %v1287
        %v1299 = vpack.c.b16 %v1290, %v1289
        %v1300 = vpack.c.b16 %v1292, %v1291
        %1309 = vmatpush.bf16.msra.mxu0 %v1300
        %1310 = vmatpush.bf16.msra.mxu0 %v1299
        %1311 = vmatpush.bf16.msra.mxu0 %v1298
        %1312 = vmatpush.bf16.msra.mxu0 %v1297
        %1313 = vmatpush.bf16.msra.mxu0 %v1296
        %1314 = vmatpush.bf16.msra.mxu0 %v1295
        %1315 = vmatpush.bf16.msra.mxu0 %v1294
        %1316 = vmatpush.bf16.msra.mxu0 %v1293
        %1317 = vmatmul.bf16.gmra.mxu0 %v1259
        %v1318 = vpop.f32.mrf.mxu0
        %v1319 = vadd.f32 %v1260, %v1318
        %v1320 = vpop.f32.mrf.mxu0
        %1321 = vdwg.mxu0
        %v1322 = vadd.f32 %v1219, %v1319
        %v1323 = vsel %vm510, %v1322, 0.0
        %1324 = vadd.xlane.f32.xlu0 %v1323
        %v1325 = vpop.xlane.xlu0 %1324
        %v1326 = vmul.f32 %v1325, %v1196
        %v1327 = vsub.f32 %v1322, %v1326
        %v1328 = vmul.f32 %v1327, %v1327
        %v1329 = vsel %vm510, %v1328, 0.0
        %1330 = vadd.xlane.f32.xlu0 %v1329
        %v1331 = vpop.xlane.xlu0 %1330
        %v1332 = vmul.f32 %v1331, %v1196
        %v1333 = vadd.f32 %v1332, 1e-12
        %v1334 = vrsqrt.pop %v1333
        %v1335 = vmul.f32 %v1334, %v1333
        %v1336 = vmul.f32 %v1335, %v1334
        %v1337 = vmul.f32 0.5, %v1336
        %v1338 = vsub.f32 1.5, %v1337
        %v1339 = vmul.f32 %v1334, %v1338
        %vm1340 = vweird.f32 %v1333
        %vm1341 = vweird.f32 %v1334
        %vm1342 = vmor %vm1340, %vm1341
        %v1343 = vsel %vm1342, %v1334, %v1339
        %v1344 = vmul.f32 %v1327, %v1343
        %v1345 = vperm.slane %v493, 6
        %v1346 = vmul.f32 %v1344, %v1345
        %v1347 = vperm.slane %v493, 7
        %v1348 = vadd.f32 %v1346, %v1347
        %1349 = vst.msk [vmem:[#allocation2] sm:$0xff] %vm510, %v1348
        %p1350 = scmp.eq.s32.totalorder %s27, 1
        // Predicated region
        $region57: #{tpu_custom_call.1} parent=51 // pred_check
          %p1351 = pneg %p1350
        $region58: #{tpu_custom_call.1} parent=51 // pred_check_branch
          %1353 = sbr.rel (%p1351) target = $region60
        $region59: #{tpu_custom_call.1} parent=51 // pred_region
          %v1354 = vld [vmem:[#allocation2] sm:$0x1]
          %vm1355 = vcmask 253952
          %1356 = vst.msk [vmem:[%s391] sm:$0x1] %vm1355, %v1354
        $region60: #{tpu_custom_call.1} parent=51 // pred_fallthru
          _
        %s1357 = sand.u32 %s245, 1
        %s1358 = scalar_lea.sflag [#allocation4], %s1357
        %s1359 = sand.u32 %s245, 1
        %s1360 = scalar_lea.vmem [#allocation3], %s1359
        // Predicated region
        $region61: #{tpu_custom_call.1} parent=51 // pred_check
          %p1361 = pneg %p255
        $region62: #{tpu_custom_call.1} parent=51 // pred_check_branch
          %1363 = sbr.rel (%p1361) target = $region64
        $region63: #{tpu_custom_call.1} parent=51 // pred_region
          %1365 = vsyncadd %s1358, 0
          %s1366 = scalar_lea.hbm %s8, %s26
          %s1368 = sshll.u32 %s1360, 4
          %s1369 = int_to_ptr.vmem [resolvable:$true] %s1368
          %s1370 = sshll.u32 %s1366, 4
          %s1371 = int_to_ptr.hbm [resolvable:$true] %s1370
          %1373 = dma.vmem_to_hbm [thread:$0]  %s1369, 16, %s1371, %s1358
        $region64: #{tpu_custom_call.1} parent=51 // pred_fallthru
          _
      $region52: #{tpu_custom_call.1} parent=5 // pred_fallthru
        _
      %p1374 = scmp.le.s32.totalorder 2, %s17
      // Predicated region
      $region65: #{tpu_custom_call.1} parent=5 // pred_check
        %p1375 = pneg %p1374
      $region66: #{tpu_custom_call.1} parent=5 // pred_check_branch
        %1377 = sbr.rel (%p1375) target = $region68
      $region67: #{tpu_custom_call.1} parent=5 // pred_region
        %s1378 = ssub.s32 %s17, 2
        // Predicated region
        $region69: #{tpu_custom_call.1} parent=67 // pred_check
          %p1379 = pneg %p261
        $region70: #{tpu_custom_call.1} parent=67 // pred_check_branch
          %1381 = sbr.rel (%p1379) target = $region72
        $region71: #{tpu_custom_call.1} parent=67 // pred_region
          %s1382 = sand.u32 %s246, 1
          %s1383 = scalar_lea.sflag [#allocation4], %s1382
          %s1384 = sand.u32 %s246, 1
          %s1385 = scalar_lea.vmem [#allocation3], %s1384
          %1387 = dma.done %s1383, 16
        $region72: #{tpu_custom_call.1} parent=67 // pred_fallthru
          _
      $region68: #{tpu_custom_call.1} parent=5 // pred_fallthru
        _
    $region6: #{tpu_custom_call.1} parent=1 // loop_footer
      %s21 = sadd.s32 1, %s17
    $region7: #{tpu_custom_call.1} parent=1 // loop_footer_branch
      %16 = sbr.rel target = $region3
    $region8: #{tpu_custom_call.1} parent=1 // loop_exit
      _
    %1388 = vsyncpa [#allocation4], 1
    %s1389 = scalar_lea.sflag [#allocation4], 1
    %1390 = vsyncpa %s1389, 1

</llo_original>
